<compile_context>
chip_gen: v6e
topology: v6e:2x2x1
jax: 0.10.0
libtpu: 0.0.40
codegen_flags: <defaults>
</compile_context>

<pallas_src>
import jax
import jax.numpy as jnp
from jax.experimental import pallas as pl
from jax.experimental.pallas import tpu as pltpu

C_PAD = 128  # lane-dense channel width: all channel axes zero-padded to 128


def _vmem_spec():
    return pl.BlockSpec(memory_space=pltpu.MemorySpace.VMEM)


# ----------------------------------------------------------------------------
# Fused TCN kernel factory.
# ----------------------------------------------------------------------------
def _build_tcn_kernel(B, T, block_cfg):
    """block_cfg: list of dicts with keys ksize, dilation, padding, down."""

    def kernel(*refs):
        # ---- unpack refs: (inputs..., output, scratch...) -------------------
        it = iter(refs)
        x_ref = next(it)
        blk_params = []
        for cfg in block_cfg:
            prm = dict(w1=next(it), b1=next(it), w2=next(it), b2=next(it))
            if cfg['down']:
                prm['wd'] = next(it)
                prm['bd'] = next(it)
            blk_params.append(prm)
        wc_ref = next(it)
        bc_ref = next(it)
        o_ref = next(it)
        in_pad = next(it)      # (B, TP, C_PAD) bf16 scratch, reused by all blocks
        mid_pad = next(it)     # (B, TP, C_PAD) bf16 scratch

        def pad_store(dst_ref, val_bf16, p):
            # causal left zero-pad + data; rows [p+T, TP) are never read.
            dst_ref[:, :p, :] = jnp.zeros((B, p, C_PAD), jnp.bfloat16)
            dst_ref[:, p:p + T, :] = val_bf16

        def conv(src_ref, w_ref, b_ref, K, d):
            # im2col: concat the K dilated tap slices along lanes, ONE matmul.
            taps = [src_ref[:, k * d:k * d + T, :] for k in range(K)]
            xk = jnp.concatenate(taps, axis=-1).reshape(B * T, K * C_PAD)
            return jnp.dot(xk, w_ref[...],
                           preferred_element_type=jnp.float32) + b_ref[...]

        h = None                              # current activation (B*T, C_PAD) f32
        for i, cfg in enumerate(block_cfg):
            p, d, K = cfg['padding'], cfg['dilation'], cfg['ksize']
            prm = blk_params[i]

            if h is None:
                blk_in_bf = x_ref[...]                         # (B,T,C_PAD) bf16
                resid_f32 = None
            else:
                blk_in_bf = h.reshape(B, T, C_PAD).astype(jnp.bfloat16)
                resid_f32 = h
            pad_store(in_pad, blk_in_bf, p)

            # conv1 (+folded BN1) -> ReLU    [dropout = identity at inference]
            a = jnp.maximum(conv(in_pad, prm['w1'], prm['b1'], K, d), 0.0)
            pad_store(mid_pad, a.astype(jnp.bfloat16).reshape(B, T, C_PAD), p)

            # conv2 (+folded BN2); only the first T outputs (== PyTorch chomp)
            c = conv(mid_pad, prm['w2'], prm['b2'], K, d)

            # residual: 1x1 downsample conv if channel counts differ
            if cfg['down']:
                res = jnp.dot(blk_in_bf.reshape(B * T, C_PAD), prm['wd'][...],
                              preferred_element_type=jnp.float32) + prm['bd'][...]
            elif resid_f32 is not None:
                res = resid_f32
            else:
                res = blk_in_bf.reshape(B * T, C_PAD).astype(jnp.float32)
            h = jnp.maximum(c + res, 0.0)      # (B*T, C_PAD) f32

        # classifier head on the last timestep (== out[:, :, -1] in NCW)
        last = jnp.concatenate(
            [h[b * T + T - 1:b * T + T, :] for b in range(B)], axis=0)  # (B, C_PAD)
        o_ref[...] = jnp.dot(last.astype(jnp.bfloat16), wc_ref[...],
                             preferred_element_type=jnp.float32) + bc_ref[...]

    return kernel


# ----------------------------------------------------------------------------
# Parameters (deterministic, synthetic) with BatchNorm folded into the weights,
# in both a "logical" (reference) and a lane-padded / flattened (kernel) form.
# ----------------------------------------------------------------------------
def init_params(key, input_dim, hidden_dim, num_layers=2, kernel_size=3):
    assert input_dim <= C_PAD and hidden_dim <= C_PAD
    eps = 1e-5
    keys = iter(jax.random.split(key, 6 * num_layers + 2))

    def conv_w(k, cin, cout, ks):
        # kernel layout (K, Cin, Cout) == PyTorch (Cout, Cin, K) transposed
        return jax.random.normal(k, (ks, cin, cout), jnp.float32) / jnp.sqrt(cin * ks)

    def pack_conv(w):  # (K, cin, cout) f32 -> (K*C_PAD, C_PAD) bf16, zero-padded
        K, cin, cout = w.shape
        wp = jnp.zeros((K, C_PAD, C_PAD), jnp.float32).at[:, :cin, :cout].set(w)
        return wp.reshape(K * C_PAD, C_PAD).astype(jnp.bfloat16)

    def pack_bias(b):  # (cout,) f32 -> (1, C_PAD) f32, zero-padded lanes
        return jnp.zeros((1, C_PAD), jnp.float32).at[0, :b.shape[0]].set(b)

    cfgs, blocks, blocks_packed = [], [], []
    in_ch = input_dim
    for i in range(num_layers):
        out_ch = hidden_dim
        d = 2 ** i
        p = (kernel_size - 1) * d
        # BatchNorm1d eval-mode defaults: gamma=1, beta=0, running mean=0, var=1
        gamma = jnp.ones((out_ch,), jnp.float32)
        beta = jnp.zeros((out_ch,), jnp.float32)
        rmean = jnp.zeros((out_ch,), jnp.float32)
        rvar = jnp.ones((out_ch,), jnp.float32)
        scale = gamma / jnp.sqrt(rvar + eps)
        shift = beta - rmean * scale

        w1 = conv_w(next(keys), in_ch, out_ch, kernel_size) * scale        # BN folded
        b1 = 0.01 * jax.random.normal(next(keys), (out_ch,), jnp.float32) * scale + shift
        w2 = conv_w(next(keys), out_ch, out_ch, kernel_size) * scale
        b2 = 0.01 * jax.random.normal(next(keys), (out_ch,), jnp.float32) * scale + shift
        kd, kbd = next(keys), next(keys)
        down = in_ch != out_ch

        blk = dict(w1=w1, b1=b1, w2=w2, b2=b2)
        pkd = dict(w1=pack_conv(w1), b1=pack_bias(b1),
                   w2=pack_conv(w2), b2=pack_bias(b2))
        if down:                                                           # 1x1 conv
            wd = conv_w(kd, in_ch, out_ch, 1)[0]
            bd = 0.01 * jax.random.normal(kbd, (out_ch,), jnp.float32)
            blk['wd'], blk['bd'] = wd, bd
            wdp = jnp.zeros((C_PAD, C_PAD), jnp.float32).at[:in_ch, :out_ch].set(wd)
            pkd['wd'] = wdp.astype(jnp.bfloat16)
            pkd['bd'] = pack_bias(bd)
        blocks.append(blk)
        blocks_packed.append(pkd)
        cfgs.append(dict(cin=in_ch, cout=out_ch, ksize=kernel_size,
                         dilation=d, padding=p, down=down))
        in_ch = out_ch

    wc = jax.random.normal(next(keys), (hidden_dim, 2), jnp.float32) / jnp.sqrt(hidden_dim)
    bc = (0.01 * jax.random.normal(next(keys), (2,), jnp.float32)).reshape(1, 2)
    wc_p = jnp.zeros((C_PAD, 2), jnp.float32).at[:hidden_dim, :].set(wc).astype(jnp.bfloat16)
    return dict(cfgs=cfgs, hidden_dim=hidden_dim,
                blocks=blocks, blocks_packed=blocks_packed,
                wc=wc, wc_p=wc_p, bc=bc)


# ----------------------------------------------------------------------------
# Forward pass: single pallas_call, everything resident in VMEM.
# ----------------------------------------------------------------------------
def tcn_forward(x, params):
    """x: (B, T, input_dim)  (same layout as the PyTorch input before .permute)."""
    B, T, din = x.shape
    cfgs = params['cfgs']
    max_pad = max(cfg['padding'] for cfg in cfgs)
    TP = ((T + max_pad + 7) // 8) * 8          # sublane-aligned padded time axis
    kern = _build_tcn_kernel(B, T, cfgs)

    # lane-dense bf16 input (channels zero-padded to C_PAD); one-time host-side op
    x_p = jnp.pad(x.astype(jnp.bfloat16), ((0, 0), (0, 0), (0, C_PAD - din)))

    args = [x_p]
    for cfg, blk in zip(cfgs, params['blocks_packed']):
        args += [blk['w1'], blk['b1'], blk['w2'], blk['b2']]
        if cfg['down']:
            args += [blk['wd'], blk['bd']]
    args += [params['wc_p'], params['bc']]

    # TODO(synk): at large batch add a grid over row tiles of B*T with
    # dimension_semantics=("parallel",) (needed to use both v7x TensorCores and
    # to stay under its 64 MiB VMEM); at B=2 the whole working set is <1 MiB.
    return pl.pallas_call(
        kern,
        out_shape=jax.ShapeDtypeStruct((B, 2), jnp.float32),
        in_specs=[_vmem_spec() for _ in args],
        out_specs=_vmem_spec(),
        scratch_shapes=[pltpu.VMEM((B, TP, C_PAD), jnp.bfloat16),   # padded block input
                        pltpu.VMEM((B, TP, C_PAD), jnp.bfloat16)],  # padded conv1 output
    )(*args)


# ----------------------------------------------------------------------------
# Pure-JAX reference mirroring the kernel's bf16 quantization points.
# ----------------------------------------------------------------------------
def tcn_reference(x, params):
    B, T, _ = x.shape
    hi = jax.lax.Precision.HIGHEST
    bf = lambda a: a.astype(jnp.bfloat16).astype(jnp.float32)
    h = None
    for cfg, blk in zip(params['cfgs'], params['blocks']):
        p, d, K = cfg['padding'], cfg['dilation'], cfg['ksize']
        if h is None:
            xin_bf = bf(x)
            xin_f32 = xin_bf
        else:
            xin_bf = bf(h)
            xin_f32 = h
        hp = jnp.pad(xin_bf, ((0, 0), (p, 0), (0, 0)))
        a = sum(jnp.einsum('btc,co->bto', hp[:, k * d:k * d + T, :], bf(blk['w1'][k]),
                           precision=hi) for k in range(K)) + blk['b1']
        a = jax.nn.relu(a)
        ap = jnp.pad(bf(a), ((0, 0), (p, 0), (0, 0)))
        c = sum(jnp.einsum('btc,co->bto', ap[:, k * d:k * d + T, :], bf(blk['w2'][k]),
                           precision=hi) for k in range(K)) + blk['b2']
        if cfg['down']:
            res = jnp.einsum('btc,co->bto', xin_bf, bf(blk['wd']), precision=hi) + blk['bd']
        else:
            res = xin_f32
        h = jax.nn.relu(c + res)
    last = bf(h[:, -1, :])
    return jnp.dot(last, bf(params['wc']), precision=hi) + params['bc']


if __name__ == "__main__":
    B, T, INPUT_DIM, HIDDEN_DIM = 2, 8, 4, 32
    x = jax.random.normal(jax.random.PRNGKey(0), (B, T, INPUT_DIM), jnp.float32)
    params = init_params(jax.random.PRNGKey(1), INPUT_DIM, HIDDEN_DIM,
                         num_layers=2, kernel_size=3)
    logits = tcn_forward(x, params)
    jax.block_until_ready(logits)
    assert logits.shape == (B, 2) and logits.dtype == jnp.float32
    ref = tcn_reference(x, params)
    assert jnp.allclose(logits, ref, rtol=2e-3, atol=2e-3), (logits, ref)
    print("KERNEL_OK")
</pallas_src>

<mosaic_0001>
module attributes {stable_mosaic.version = 11 : i64} {
  func.func @kernel(%arg0: memref<2x8x128xbf16, #tpu.memory_space<vmem>>, %arg1: memref<384x128xbf16, #tpu.memory_space<vmem>>, %arg2: memref<1x128xf32, #tpu.memory_space<vmem>>, %arg3: memref<384x128xbf16, #tpu.memory_space<vmem>>, %arg4: memref<1x128xf32, #tpu.memory_space<vmem>>, %arg5: memref<128x128xbf16, #tpu.memory_space<vmem>>, %arg6: memref<1x128xf32, #tpu.memory_space<vmem>>, %arg7: memref<384x128xbf16, #tpu.memory_space<vmem>>, %arg8: memref<1x128xf32, #tpu.memory_space<vmem>>, %arg9: memref<384x128xbf16, #tpu.memory_space<vmem>>, %arg10: memref<1x128xf32, #tpu.memory_space<vmem>>, %arg11: memref<128x2xbf16, #tpu.memory_space<vmem>>, %arg12: memref<1x2xf32, #tpu.memory_space<vmem>>, %arg13: memref<2x2xf32, #tpu.memory_space<vmem>>, %arg14: memref<2x16x128xbf16, #tpu.memory_space<vmem>>, %arg15: memref<2x16x128xbf16, #tpu.memory_space<vmem>>) attributes {dimension_semantics = [], scalar_prefetch = 0 : i64, scratch_operands = 2 : i64, tpu.core_type = #tpu.core_type<tc>} {
    %c0 = arith.constant 0 : index
    %c0_0 = arith.constant 0 : index
    %c0_1 = arith.constant 0 : index
    %0 = vector.load %arg0[%c0, %c0_0, %c0_1] : memref<2x8x128xbf16, #tpu.memory_space<vmem>>, vector<2x8x128xbf16>
    %cst = arith.constant 0.000000e+00 : bf16
    %1 = vector.broadcast %cst : bf16 to vector<2x2x128xbf16>
    %c0_2 = arith.constant 0 : index
    %c0_3 = arith.constant 0 : index
    %c0_4 = arith.constant 0 : index
    %2 = vector.load %arg14[%c0_2, %c0_3, %c0_4] : memref<2x16x128xbf16, #tpu.memory_space<vmem>>, vector<2x2x128xbf16>
    tpu.vector_store %arg14[%c0_2, %c0_3, %c0_4], %1 {strides = array<i32>} : memref<2x16x128xbf16, #tpu.memory_space<vmem>>, vector<2x2x128xbf16>,
    %c0_5 = arith.constant 0 : index
    %c2 = arith.constant 2 : index
    %c0_6 = arith.constant 0 : index
    %3 = vector.load %arg14[%c0_5, %c2, %c0_6] : memref<2x16x128xbf16, #tpu.memory_space<vmem>>, vector<2x8x128xbf16>
    tpu.vector_store %arg14[%c0_5, %c2, %c0_6], %0 {strides = array<i32>} : memref<2x16x128xbf16, #tpu.memory_space<vmem>>, vector<2x8x128xbf16>,
    %c0_7 = arith.constant 0 : index
    %c0_8 = arith.constant 0 : index
    %c0_9 = arith.constant 0 : index
    %4 = vector.load %arg14[%c0_7, %c0_8, %c0_9] : memref<2x16x128xbf16, #tpu.memory_space<vmem>>, vector<2x8x128xbf16>
    %c0_10 = arith.constant 0 : index
    %c1 = arith.constant 1 : index
    %c0_11 = arith.constant 0 : index
    %5 = vector.load %arg14[%c0_10, %c1, %c0_11] : memref<2x16x128xbf16, #tpu.memory_space<vmem>>, vector<2x8x128xbf16>
    %c0_12 = arith.constant 0 : index
    %c2_13 = arith.constant 2 : index
    %c0_14 = arith.constant 0 : index
    %6 = vector.load %arg14[%c0_12, %c2_13, %c0_14] : memref<2x16x128xbf16, #tpu.memory_space<vmem>>, vector<2x8x128xbf16>
    %7 = tpu.concatenate %4, %5, %6 in 2 : vector<2x8x128xbf16>, vector<2x8x128xbf16>, vector<2x8x128xbf16> -> vector<2x8x384xbf16>
    %8 = vector.shape_cast %7 : vector<2x8x384xbf16> to vector<16x384xbf16>
    %c0_15 = arith.constant 0 : index
    %c0_16 = arith.constant 0 : index
    %9 = vector.load %arg1[%c0_15, %c0_16] : memref<384x128xbf16, #tpu.memory_space<vmem>>, vector<384x128xbf16>
    %cst_17 = arith.constant dense<0.000000e+00> : vector<16x128xf32>
    %10 = tpu.matmul %8, %9, %cst_17 {dimension_numbers = #tpu.dot_dimension_numbers<[1], [0], [0], [1], [0, 0, 1, 1], [], []>} : vector<16x384xbf16>, vector<384x128xbf16>, vector<16x128xf32> -> vector<16x128xf32>
    %c0_18 = arith.constant 0 : index
    %c0_19 = arith.constant 0 : index
    %11 = vector.load %arg2[%c0_18, %c0_19] : memref<1x128xf32, #tpu.memory_space<vmem>>, vector<1x128xf32>
    %12 = vector.broadcast %11 : vector<1x128xf32> to vector<16x128xf32>
    %13 = arith.addf %10, %12 : vector<16x128xf32>
    %cst_20 = arith.constant 0.000000e+00 : f32
    %14 = vector.broadcast %cst_20 : f32 to vector<16x128xf32>
    %15 = arith.maximumf %13, %14 : vector<16x128xf32>
    %16 = arith.truncf %15 : vector<16x128xf32> to vector<16x128xbf16>
    %17 = vector.shape_cast %16 : vector<16x128xbf16> to vector<2x8x128xbf16>
    %cst_21 = arith.constant 0.000000e+00 : bf16
    %18 = vector.broadcast %cst_21 : bf16 to vector<2x2x128xbf16>
    %c0_22 = arith.constant 0 : index
    %c0_23 = arith.constant 0 : index
    %c0_24 = arith.constant 0 : index
    %19 = vector.load %arg15[%c0_22, %c0_23, %c0_24] : memref<2x16x128xbf16, #tpu.memory_space<vmem>>, vector<2x2x128xbf16>
    tpu.vector_store %arg15[%c0_22, %c0_23, %c0_24], %18 {strides = array<i32>} : memref<2x16x128xbf16, #tpu.memory_space<vmem>>, vector<2x2x128xbf16>,
    %c0_25 = arith.constant 0 : index
    %c2_26 = arith.constant 2 : index
    %c0_27 = arith.constant 0 : index
    %20 = vector.load %arg15[%c0_25, %c2_26, %c0_27] : memref<2x16x128xbf16, #tpu.memory_space<vmem>>, vector<2x8x128xbf16>
    tpu.vector_store %arg15[%c0_25, %c2_26, %c0_27], %17 {strides = array<i32>} : memref<2x16x128xbf16, #tpu.memory_space<vmem>>, vector<2x8x128xbf16>,
    %c0_28 = arith.constant 0 : index
    %c0_29 = arith.constant 0 : index
    %c0_30 = arith.constant 0 : index
    %21 = vector.load %arg15[%c0_28, %c0_29, %c0_30] : memref<2x16x128xbf16, #tpu.memory_space<vmem>>, vector<2x8x128xbf16>
    %c0_31 = arith.constant 0 : index
    %c1_32 = arith.constant 1 : index
    %c0_33 = arith.constant 0 : index
    %22 = vector.load %arg15[%c0_31, %c1_32, %c0_33] : memref<2x16x128xbf16, #tpu.memory_space<vmem>>, vector<2x8x128xbf16>
    %c0_34 = arith.constant 0 : index
    %c2_35 = arith.constant 2 : index
    %c0_36 = arith.constant 0 : index
    %23 = vector.load %arg15[%c0_34, %c2_35, %c0_36] : memref<2x16x128xbf16, #tpu.memory_space<vmem>>, vector<2x8x128xbf16>
    %24 = tpu.concatenate %21, %22, %23 in 2 : vector<2x8x128xbf16>, vector<2x8x128xbf16>, vector<2x8x128xbf16> -> vector<2x8x384xbf16>
    %25 = vector.shape_cast %24 : vector<2x8x384xbf16> to vector<16x384xbf16>
    %c0_37 = arith.constant 0 : index
    %c0_38 = arith.constant 0 : index
    %26 = vector.load %arg3[%c0_37, %c0_38] : memref<384x128xbf16, #tpu.memory_space<vmem>>, vector<384x128xbf16>
    %cst_39 = arith.constant dense<0.000000e+00> : vector<16x128xf32>
    %27 = tpu.matmul %25, %26, %cst_39 {dimension_numbers = #tpu.dot_dimension_numbers<[1], [0], [0], [1], [0, 0, 1, 1], [], []>} : vector<16x384xbf16>, vector<384x128xbf16>, vector<16x128xf32> -> vector<16x128xf32>
    %c0_40 = arith.constant 0 : index
    %c0_41 = arith.constant 0 : index
    %28 = vector.load %arg4[%c0_40, %c0_41] : memref<1x128xf32, #tpu.memory_space<vmem>>, vector<1x128xf32>
    %29 = vector.broadcast %28 : vector<1x128xf32> to vector<16x128xf32>
    %30 = arith.addf %27, %29 : vector<16x128xf32>
    %31 = vector.shape_cast %0 : vector<2x8x128xbf16> to vector<16x128xbf16>
    %c0_42 = arith.constant 0 : index
    %c0_43 = arith.constant 0 : index
    %32 = vector.load %arg5[%c0_42, %c0_43] : memref<128x128xbf16, #tpu.memory_space<vmem>>, vector<128x128xbf16>
    %cst_44 = arith.constant dense<0.000000e+00> : vector<16x128xf32>
    %33 = tpu.matmul %31, %32, %cst_44 {dimension_numbers = #tpu.dot_dimension_numbers<[1], [0], [0], [1], [0, 0, 1, 1], [], []>} : vector<16x128xbf16>, vector<128x128xbf16>, vector<16x128xf32> -> vector<16x128xf32>
    %c0_45 = arith.constant 0 : index
    %c0_46 = arith.constant 0 : index
    %34 = vector.load %arg6[%c0_45, %c0_46] : memref<1x128xf32, #tpu.memory_space<vmem>>, vector<1x128xf32>
    %35 = vector.broadcast %34 : vector<1x128xf32> to vector<16x128xf32>
    %36 = arith.addf %33, %35 : vector<16x128xf32>
    %37 = arith.addf %30, %36 : vector<16x128xf32>
    %cst_47 = arith.constant 0.000000e+00 : f32
    %38 = vector.broadcast %cst_47 : f32 to vector<16x128xf32>
    %39 = arith.maximumf %37, %38 : vector<16x128xf32>
    %40 = vector.shape_cast %39 : vector<16x128xf32> to vector<2x8x128xf32>
    %41 = arith.truncf %40 : vector<2x8x128xf32> to vector<2x8x128xbf16>
    %cst_48 = arith.constant 0.000000e+00 : bf16
    %42 = vector.broadcast %cst_48 : bf16 to vector<2x4x128xbf16>
    %c0_49 = arith.constant 0 : index
    %c0_50 = arith.constant 0 : index
    %c0_51 = arith.constant 0 : index
    %43 = vector.load %arg14[%c0_49, %c0_50, %c0_51] : memref<2x16x128xbf16, #tpu.memory_space<vmem>>, vector<2x4x128xbf16>
    tpu.vector_store %arg14[%c0_49, %c0_50, %c0_51], %42 {strides = array<i32>} : memref<2x16x128xbf16, #tpu.memory_space<vmem>>, vector<2x4x128xbf16>,
    %c0_52 = arith.constant 0 : index
    %c4 = arith.constant 4 : index
    %c0_53 = arith.constant 0 : index
    %44 = vector.load %arg14[%c0_52, %c4, %c0_53] : memref<2x16x128xbf16, #tpu.memory_space<vmem>>, vector<2x8x128xbf16>
    tpu.vector_store %arg14[%c0_52, %c4, %c0_53], %41 {strides = array<i32>} : memref<2x16x128xbf16, #tpu.memory_space<vmem>>, vector<2x8x128xbf16>,
    %c0_54 = arith.constant 0 : index
    %c0_55 = arith.constant 0 : index
    %c0_56 = arith.constant 0 : index
    %45 = vector.load %arg14[%c0_54, %c0_55, %c0_56] : memref<2x16x128xbf16, #tpu.memory_space<vmem>>, vector<2x8x128xbf16>
    %c0_57 = arith.constant 0 : index
    %c2_58 = arith.constant 2 : index
    %c0_59 = arith.constant 0 : index
    %46 = vector.load %arg14[%c0_57, %c2_58, %c0_59] : memref<2x16x128xbf16, #tpu.memory_space<vmem>>, vector<2x8x128xbf16>
    %c0_60 = arith.constant 0 : index
    %c4_61 = arith.constant 4 : index
    %c0_62 = arith.constant 0 : index
    %47 = vector.load %arg14[%c0_60, %c4_61, %c0_62] : memref<2x16x128xbf16, #tpu.memory_space<vmem>>, vector<2x8x128xbf16>
    %48 = tpu.concatenate %45, %46, %47 in 2 : vector<2x8x128xbf16>, vector<2x8x128xbf16>, vector<2x8x128xbf16> -> vector<2x8x384xbf16>
    %49 = vector.shape_cast %48 : vector<2x8x384xbf16> to vector<16x384xbf16>
    %c0_63 = arith.constant 0 : index
    %c0_64 = arith.constant 0 : index
    %50 = vector.load %arg7[%c0_63, %c0_64] : memref<384x128xbf16, #tpu.memory_space<vmem>>, vector<384x128xbf16>
    %cst_65 = arith.constant dense<0.000000e+00> : vector<16x128xf32>
    %51 = tpu.matmul %49, %50, %cst_65 {dimension_numbers = #tpu.dot_dimension_numbers<[1], [0], [0], [1], [0, 0, 1, 1], [], []>} : vector<16x384xbf16>, vector<384x128xbf16>, vector<16x128xf32> -> vector<16x128xf32>
    %c0_66 = arith.constant 0 : index
    %c0_67 = arith.constant 0 : index
    %52 = vector.load %arg8[%c0_66, %c0_67] : memref<1x128xf32, #tpu.memory_space<vmem>>, vector<1x128xf32>
    %53 = vector.broadcast %52 : vector<1x128xf32> to vector<16x128xf32>
    %54 = arith.addf %51, %53 : vector<16x128xf32>
    %cst_68 = arith.constant 0.000000e+00 : f32
    %55 = vector.broadcast %cst_68 : f32 to vector<16x128xf32>
    %56 = arith.maximumf %54, %55 : vector<16x128xf32>
    %57 = arith.truncf %56 : vector<16x128xf32> to vector<16x128xbf16>
    %58 = vector.shape_cast %57 : vector<16x128xbf16> to vector<2x8x128xbf16>
    %cst_69 = arith.constant 0.000000e+00 : bf16
    %59 = vector.broadcast %cst_69 : bf16 to vector<2x4x128xbf16>
    %c0_70 = arith.constant 0 : index
    %c0_71 = arith.constant 0 : index
    %c0_72 = arith.constant 0 : index
    %60 = vector.load %arg15[%c0_70, %c0_71, %c0_72] : memref<2x16x128xbf16, #tpu.memory_space<vmem>>, vector<2x4x128xbf16>
    tpu.vector_store %arg15[%c0_70, %c0_71, %c0_72], %59 {strides = array<i32>} : memref<2x16x128xbf16, #tpu.memory_space<vmem>>, vector<2x4x128xbf16>,
    %c0_73 = arith.constant 0 : index
    %c4_74 = arith.constant 4 : index
    %c0_75 = arith.constant 0 : index
    %61 = vector.load %arg15[%c0_73, %c4_74, %c0_75] : memref<2x16x128xbf16, #tpu.memory_space<vmem>>, vector<2x8x128xbf16>
    tpu.vector_store %arg15[%c0_73, %c4_74, %c0_75], %58 {strides = array<i32>} : memref<2x16x128xbf16, #tpu.memory_space<vmem>>, vector<2x8x128xbf16>,
    %c0_76 = arith.constant 0 : index
    %c0_77 = arith.constant 0 : index
    %c0_78 = arith.constant 0 : index
    %62 = vector.load %arg15[%c0_76, %c0_77, %c0_78] : memref<2x16x128xbf16, #tpu.memory_space<vmem>>, vector<2x8x128xbf16>
    %c0_79 = arith.constant 0 : index
    %c2_80 = arith.constant 2 : index
    %c0_81 = arith.constant 0 : index
    %63 = vector.load %arg15[%c0_79, %c2_80, %c0_81] : memref<2x16x128xbf16, #tpu.memory_space<vmem>>, vector<2x8x128xbf16>
    %c0_82 = arith.constant 0 : index
    %c4_83 = arith.constant 4 : index
    %c0_84 = arith.constant 0 : index
    %64 = vector.load %arg15[%c0_82, %c4_83, %c0_84] : memref<2x16x128xbf16, #tpu.memory_space<vmem>>, vector<2x8x128xbf16>
    %65 = tpu.concatenate %62, %63, %64 in 2 : vector<2x8x128xbf16>, vector<2x8x128xbf16>, vector<2x8x128xbf16> -> vector<2x8x384xbf16>
    %66 = vector.shape_cast %65 : vector<2x8x384xbf16> to vector<16x384xbf16>
    %c0_85 = arith.constant 0 : index
    %c0_86 = arith.constant 0 : index
    %67 = vector.load %arg9[%c0_85, %c0_86] : memref<384x128xbf16, #tpu.memory_space<vmem>>, vector<384x128xbf16>
    %cst_87 = arith.constant dense<0.000000e+00> : vector<16x128xf32>
    %68 = tpu.matmul %66, %67, %cst_87 {dimension_numbers = #tpu.dot_dimension_numbers<[1], [0], [0], [1], [0, 0, 1, 1], [], []>} : vector<16x384xbf16>, vector<384x128xbf16>, vector<16x128xf32> -> vector<16x128xf32>
    %c0_88 = arith.constant 0 : index
    %c0_89 = arith.constant 0 : index
    %69 = vector.load %arg10[%c0_88, %c0_89] : memref<1x128xf32, #tpu.memory_space<vmem>>, vector<1x128xf32>
    %70 = vector.broadcast %69 : vector<1x128xf32> to vector<16x128xf32>
    %71 = arith.addf %68, %70 : vector<16x128xf32>
    %72 = arith.addf %71, %39 : vector<16x128xf32>
    %cst_90 = arith.constant 0.000000e+00 : f32
    %73 = vector.broadcast %cst_90 : f32 to vector<16x128xf32>
    %74 = arith.maximumf %72, %73 : vector<16x128xf32>
    %75 = vector.extract_strided_slice %74 {offsets = [7, 0], sizes = [1, 128], strides = [1, 1]} : vector<16x128xf32> to vector<1x128xf32>
    %76 = vector.extract_strided_slice %74 {offsets = [15, 0], sizes = [1, 128], strides = [1, 1]} : vector<16x128xf32> to vector<1x128xf32>
    %77 = tpu.concatenate %75, %76 in 0 : vector<1x128xf32>, vector<1x128xf32> -> vector<2x128xf32>
    %78 = arith.truncf %77 : vector<2x128xf32> to vector<2x128xbf16>
    %c0_91 = arith.constant 0 : index
    %c0_92 = arith.constant 0 : index
    %79 = vector.load %arg11[%c0_91, %c0_92] : memref<128x2xbf16, #tpu.memory_space<vmem>>, vector<128x2xbf16>
    %cst_93 = arith.constant dense<0.000000e+00> : vector<2x2xf32>
    %80 = tpu.matmul %78, %79, %cst_93 {dimension_numbers = #tpu.dot_dimension_numbers<[1], [0], [0], [1], [0, 0, 1, 1], [], []>} : vector<2x128xbf16>, vector<128x2xbf16>, vector<2x2xf32> -> vector<2x2xf32>
    %c0_94 = arith.constant 0 : index
    %c0_95 = arith.constant 0 : index
    %81 = vector.load %arg12[%c0_94, %c0_95] : memref<1x2xf32, #tpu.memory_space<vmem>>, vector<1x2xf32>
    %82 = vector.broadcast %81 : vector<1x2xf32> to vector<2x2xf32>
    %83 = arith.addf %80, %82 : vector<2x2xf32>
    %c0_96 = arith.constant 0 : index
    %c0_97 = arith.constant 0 : index
    %84 = vector.load %arg13[%c0_96, %c0_97] : memref<2x2xf32, #tpu.memory_space<vmem>>, vector<2x2xf32>
    tpu.vector_store %arg13[%c0_96, %c0_97], %83 {strides = array<i32>} : memref<2x2xf32, #tpu.memory_space<vmem>>, vector<2x2xf32>,
    return
  }
}

</mosaic_0001>

<llo_original>
// kernel: tpu_custom_call.1
$region0: #{tpu_custom_call.1}
  #allocation0 [shape = 'u32[]', space=smem, size = 0x4, offset = 0x4, fixed_abs, tag = 'smem constant byte address 0x4 - core index']
  #allocation1 [shape = 'u32[144,128]{1,0:T(1,128)}', space=vmem, size = 0x12000, scoped, tag = 'internal scratch']
  #allocation2 [shape = 'bf16[2,16,128]{2,1,0:T(8,128)(2,1)}', space=vmem, size = 0x2000, scoped, tag = 'scratch operand']
  #allocation3 [shape = 'bf16[2,16,128]{2,1,0:T(8,128)(2,1)}', space=vmem, size = 0x2000, scoped, tag = 'scratch operand']
  %s0 = inlined_call_operand.vmem [shape: bf16[2,8,128], index: 0, kind: input, shape index: {}]
  %s1 = inlined_call_operand.hbm [shape: bf16[384,128], index: 1, kind: input, shape index: {}]
  %s2 = inlined_call_operand.vmem [shape: f32[1,128], index: 2, kind: input, shape index: {}]
  %s3 = inlined_call_operand.hbm [shape: bf16[384,128], index: 3, kind: input, shape index: {}]
  %s4 = inlined_call_operand.vmem [shape: f32[1,128], index: 4, kind: input, shape index: {}]
  %s5 = inlined_call_operand.vmem [shape: bf16[128,128], index: 5, kind: input, shape index: {}]
  %s6 = inlined_call_operand.vmem [shape: f32[1,128], index: 6, kind: input, shape index: {}]
  %s7 = inlined_call_operand.hbm [shape: bf16[384,128], index: 7, kind: input, shape index: {}]
  %s8 = inlined_call_operand.vmem [shape: f32[1,128], index: 8, kind: input, shape index: {}]
  %s9 = inlined_call_operand.hbm [shape: bf16[384,128], index: 9, kind: input, shape index: {}]
  %s10 = inlined_call_operand.vmem [shape: f32[1,128], index: 10, kind: input, shape index: {}]
  %s11 = inlined_call_operand.vmem [shape: bf16[128,2], index: 11, kind: input, shape index: {}]
  %s12 = inlined_call_operand.vmem [shape: f32[1,2], index: 12, kind: input, shape index: {}]
  %s13 = inlined_call_operand.hbm [shape: f32[2,2], index: 13, kind: output, shape index: {}]
  %s14 = sld [smem:[#allocation0]]
  $region78: #{tpu_custom_call.1} parent=0
    _
  %s16 = ssub.s32 1, %s14
  %s17 = scalar_select 0, %s16, %s14
  $region1: #{tpu_custom_call.1} parent=0
    #allocation4 [shape = 'u8[98304]{0}', space=vmem, size = 0x18000, scoped, tag = 'input window, operand 1, single buffered']
    #allocation5 [shape = 's32[1]{0}', space=sflag, size = 0x4, scoped, tag = 'scoped memory for tpu_custom_call.1']
    #allocation6 [shape = 's32[1]{0}', space=sflag, size = 0x4, scoped, tag = 'scoped memory for tpu_custom_call.1']
    #allocation7 [shape = 'u8[98304]{0}', space=vmem, size = 0x18000, scoped, tag = 'input window, operand 3, single buffered']
    #allocation8 [shape = 's32[1]{0}', space=sflag, size = 0x4, scoped, tag = 'scoped memory for tpu_custom_call.1']
    #allocation9 [shape = 'u8[98304]{0}', space=vmem, size = 0x18000, scoped, tag = 'input window, operand 7, single buffered']
    #allocation10 [shape = 'u8[98304]{0}', space=vmem, size = 0x18000, scoped, tag = 'input window, operand 9, single buffered']
    #allocation11 [shape = 's32[1]{0}', space=sflag, size = 0x4, scoped, tag = 'scoped memory for tpu_custom_call.1']
    #allocation12 [shape = 'u8[1024]{0}', space=vmem, size = 0x400, scoped, tag = 'output window, operand 0, single buffered']
    %18 = vsyncpa [#allocation5], 0
    %19 = vsyncpa [#allocation8], 0
    %20 = vsyncpa [#allocation11], 0
    %21 = vsyncpa [#allocation6], 0
    // Predicated region
    $region2: #{tpu_custom_call.1} parent=1 // pred_check
      _
    $region3: #{tpu_custom_call.1} parent=1 // pred_check_branch
      %23 = sbr.rel (0) target = $region5
    $region4: #{tpu_custom_call.1} parent=1 // pred_region
      _
    $region5: #{tpu_custom_call.1} parent=1 // pred_fallthru
      _
    // Predicated region
    $region6: #{tpu_custom_call.1} parent=1 // pred_check
      _
    $region7: #{tpu_custom_call.1} parent=1 // pred_check_branch
      %25 = sbr.rel (0) target = $region9
    $region8: #{tpu_custom_call.1} parent=1 // pred_region
      %s27 = ssub.s32 3072, 3072
      %28 = vsyncadd [#allocation5], %s27
      %s29 = sshll.u32 [#allocation4], 4
      %s30 = int_to_ptr.vmem [resolvable:$true] %s29
      %35 = dma.hbm_to_vmem [thread:$0]  %s1, 3072, %s30, [#allocation5], 64, 64, 4
    $region9: #{tpu_custom_call.1} parent=1 // pred_fallthru
      _
    // Predicated region
    $region10: #{tpu_custom_call.1} parent=1 // pred_check
      _
    $region11: #{tpu_custom_call.1} parent=1 // pred_check_branch
      %37 = sbr.rel (0) target = $region13
    $region12: #{tpu_custom_call.1} parent=1 // pred_region
      _
    $region13: #{tpu_custom_call.1} parent=1 // pred_fallthru
      _
    // Predicated region
    $region14: #{tpu_custom_call.1} parent=1 // pred_check
      _
    $region15: #{tpu_custom_call.1} parent=1 // pred_check_branch
      %39 = sbr.rel (0) target = $region17
    $region16: #{tpu_custom_call.1} parent=1 // pred_region
      %s41 = ssub.s32 3072, 3072
      %42 = vsyncadd [#allocation8], %s41
      %s43 = sshll.u32 [#allocation7], 4
      %s44 = int_to_ptr.vmem [resolvable:$true] %s43
      %49 = dma.hbm_to_vmem [thread:$0]  %s3, 3072, %s44, [#allocation8], 64, 64, 4
    $region17: #{tpu_custom_call.1} parent=1 // pred_fallthru
      _
    // Predicated region
    $region18: #{tpu_custom_call.1} parent=1 // pred_check
      _
    $region19: #{tpu_custom_call.1} parent=1 // pred_check_branch
      %51 = sbr.rel (0) target = $region21
    $region20: #{tpu_custom_call.1} parent=1 // pred_region
      _
    $region21: #{tpu_custom_call.1} parent=1 // pred_fallthru
      _
    // Predicated region
    $region22: #{tpu_custom_call.1} parent=1 // pred_check
      _
    $region23: #{tpu_custom_call.1} parent=1 // pred_check_branch
      %53 = sbr.rel (0) target = $region25
    $region24: #{tpu_custom_call.1} parent=1 // pred_region
      _
    $region25: #{tpu_custom_call.1} parent=1 // pred_fallthru
      _
    // Predicated region
    $region26: #{tpu_custom_call.1} parent=1 // pred_check
      _
    $region27: #{tpu_custom_call.1} parent=1 // pred_check_branch
      %55 = sbr.rel (0) target = $region29
    $region28: #{tpu_custom_call.1} parent=1 // pred_region
      _
    $region29: #{tpu_custom_call.1} parent=1 // pred_fallthru
      _
    // Predicated region
    $region30: #{tpu_custom_call.1} parent=1 // pred_check
      _
    $region31: #{tpu_custom_call.1} parent=1 // pred_check_branch
      %57 = sbr.rel (0) target = $region33
    $region32: #{tpu_custom_call.1} parent=1 // pred_region
      %s59 = ssub.s32 3072, 3072
      %60 = vsyncadd [#allocation8], %s59
      %s61 = sshll.u32 [#allocation9], 4
      %s62 = int_to_ptr.vmem [resolvable:$true] %s61
      %67 = dma.hbm_to_vmem [thread:$0]  %s7, 3072, %s62, [#allocation8], 64, 64, 4
    $region33: #{tpu_custom_call.1} parent=1 // pred_fallthru
      _
    // Predicated region
    $region34: #{tpu_custom_call.1} parent=1 // pred_check
      _
    $region35: #{tpu_custom_call.1} parent=1 // pred_check_branch
      %69 = sbr.rel (0) target = $region37
    $region36: #{tpu_custom_call.1} parent=1 // pred_region
      _
    $region37: #{tpu_custom_call.1} parent=1 // pred_fallthru
      _
    // Predicated region
    $region38: #{tpu_custom_call.1} parent=1 // pred_check
      _
    $region39: #{tpu_custom_call.1} parent=1 // pred_check_branch
      %71 = sbr.rel (0) target = $region41
    $region40: #{tpu_custom_call.1} parent=1 // pred_region
      %s73 = ssub.s32 3072, 3072
      %74 = vsyncadd [#allocation11], %s73
      %s75 = sshll.u32 [#allocation10], 4
      %s76 = int_to_ptr.vmem [resolvable:$true] %s75
      %81 = dma.hbm_to_vmem [thread:$0]  %s9, 3072, %s76, [#allocation11], 64, 64, 4
    $region41: #{tpu_custom_call.1} parent=1 // pred_fallthru
      _
    // Predicated region
    $region42: #{tpu_custom_call.1} parent=1 // pred_check
      _
    $region43: #{tpu_custom_call.1} parent=1 // pred_check_branch
      %83 = sbr.rel (0) target = $region45
    $region44: #{tpu_custom_call.1} parent=1 // pred_region
      _
    $region45: #{tpu_custom_call.1} parent=1 // pred_fallthru
      _
    // Predicated region
    $region46: #{tpu_custom_call.1} parent=1 // pred_check
      _
    $region47: #{tpu_custom_call.1} parent=1 // pred_check_branch
      %85 = sbr.rel (0) target = $region49
    $region48: #{tpu_custom_call.1} parent=1 // pred_region
      _
    $region49: #{tpu_custom_call.1} parent=1 // pred_fallthru
      _
    // Predicated region
    $region50: #{tpu_custom_call.1} parent=1 // pred_check
      _
    $region51: #{tpu_custom_call.1} parent=1 // pred_check_branch
      %87 = sbr.rel (0) target = $region53
    $region52: #{tpu_custom_call.1} parent=1 // pred_region
      _
    $region53: #{tpu_custom_call.1} parent=1 // pred_fallthru
      _
    // Predicated region
    $region54: #{tpu_custom_call.1} parent=1 // pred_check
      _
    $region55: #{tpu_custom_call.1} parent=1 // pred_check_branch
      %89 = sbr.rel (0) target = $region57
    $region56: #{tpu_custom_call.1} parent=1 // pred_region
      %90 = dma.done [#allocation5], 3072
    $region57: #{tpu_custom_call.1} parent=1 // pred_fallthru
      _
    // Predicated region
    $region58: #{tpu_custom_call.1} parent=1 // pred_check
      _
    $region59: #{tpu_custom_call.1} parent=1 // pred_check_branch
      %92 = sbr.rel (0) target = $region61
    $region60: #{tpu_custom_call.1} parent=1 // pred_region
      %93 = dma.done [#allocation8], 3072
    $region61: #{tpu_custom_call.1} parent=1 // pred_fallthru
      _
    // Predicated region
    $region62: #{tpu_custom_call.1} parent=1 // pred_check
      _
    $region63: #{tpu_custom_call.1} parent=1 // pred_check_branch
      %95 = sbr.rel (0) target = $region65
    $region64: #{tpu_custom_call.1} parent=1 // pred_region
      %96 = dma.done [#allocation8], 3072
    $region65: #{tpu_custom_call.1} parent=1 // pred_fallthru
      _
    // Predicated region
    $region66: #{tpu_custom_call.1} parent=1 // pred_check
      _
    $region67: #{tpu_custom_call.1} parent=1 // pred_check_branch
      %98 = sbr.rel (0) target = $region69
    $region68: #{tpu_custom_call.1} parent=1 // pred_region
      %99 = dma.done [#allocation11], 3072
    $region69: #{tpu_custom_call.1} parent=1 // pred_fallthru
      _
    %v101 = vld [vmem:[%s0] sm:$0xf]
    %v102 = vld [vmem:[%s0 + $0x4] sm:$0xf]
    %103 = vst [vmem:[#allocation2] sm:$0x1] 0
    %104 = vst [vmem:[#allocation2 + $0x8] sm:$0x1] 0
    %v107 = vrot.slane %v101, 7
    %v108 = vrot.slane %v107, 4
    %v109 = vrot.slane %v102, 7
    %v110 = vrot.slane %v109, 4
    %115 = vst [vmem:[#allocation2] sm:$0xe] %v107
    %116 = vst [vmem:[#allocation2 + $0x4] sm:$0x1] %v108
    %117 = vst [vmem:[#allocation2 + $0x8] sm:$0xe] %v109
    %118 = vst [vmem:[#allocation2 + $0xc] sm:$0x1] %v110
    %v119 = vld [vmem:[#allocation2] sm:$0xf]
    %v120 = vld [vmem:[#allocation2 + $0x8] sm:$0xf]
    %v121 = vld [vmem:[#allocation2] sm:$0xf]
    %v122 = vld [vmem:[#allocation2 + $0x4] sm:$0x1]
    %v123 = vld [vmem:[#allocation2 + $0x8] sm:$0xf]
    %v124 = vld [vmem:[#allocation2 + $0xc] sm:$0x1]
    %v125 = vld [vmem:[#allocation2] sm:$0xe]
    %v126 = vld [vmem:[#allocation2 + $0x8] sm:$0xe]
    %v131 = vunpack.c.l.b16 %v121
    %v132 = vunpack.c.l.b16 %v122
    %v133 = vunpack.c.l.b16 %v123
    %v134 = vunpack.c.l.b16 %v124
    %v135 = vpack.c.b16 %v132, %v131
    %v136 = vpack.c.b16 %v134, %v133
    %v138 = vshrl.u32 %v135, 16
    %v140 = vshll.u32 %v135, 16
    %v142 = vrot.slane %v140, 1
    %v143 = vor.u32 %v138, %v142
    %v145 = vshrl.u32 %v136, 16
    %v147 = vshll.u32 %v136, 16
    %v149 = vrot.slane %v147, 1
    %v150 = vor.u32 %v145, %v149
    %v153 = vunpack.c.l.b16 %v125
    %v154 = vunpack.c.l.b16 %v126
    %v155 = vpack.c.b16 %v132, %v153
    %v156 = vpack.c.b16 %v134, %v154
    %v157 = vrot.slane %v155, 1
    %v158 = vrot.slane %v156, 1
    %v161 = vunpack.c.l.b16 %v119
    %v162 = vunpack.c.l.b16 %v143
    %v163 = vunpack.c.l.b16 %v157
    %v164 = vunpack.c.l.b16 %v120
    %v165 = vunpack.c.l.b16 %v150
    %v166 = vunpack.c.l.b16 %v158
    %v167 = vld [vmem:[#allocation4] sm:$0xf]
    %v168 = vld [vmem:[#allocation4 + $0x4] sm:$0xf]
    %v169 = vld [vmem:[#allocation4 + $0x8] sm:$0xf]
    %v170 = vld [vmem:[#allocation4 + $0xc] sm:$0xf]
    %v171 = vld [vmem:[#allocation4 + $0x10] sm:$0xf]
    %v172 = vld [vmem:[#allocation4 + $0x14] sm:$0xf]
    %v173 = vld [vmem:[#allocation4 + $0x18] sm:$0xf]
    %v174 = vld [vmem:[#allocation4 + $0x1c] sm:$0xf]
    %v175 = vld [vmem:[#allocation4 + $0x20] sm:$0xf]
    %v176 = vld [vmem:[#allocation4 + $0x24] sm:$0xf]
    %v177 = vld [vmem:[#allocation4 + $0x28] sm:$0xf]
    %v178 = vld [vmem:[#allocation4 + $0x2c] sm:$0xf]
    %v179 = vld [vmem:[#allocation4 + $0x30] sm:$0xf]
    %v180 = vld [vmem:[#allocation4 + $0x34] sm:$0xf]
    %v181 = vld [vmem:[#allocation4 + $0x38] sm:$0xf]
    %v182 = vld [vmem:[#allocation4 + $0x3c] sm:$0xf]
    %v183 = vld [vmem:[#allocation4 + $0x40] sm:$0xf]
    %v184 = vld [vmem:[#allocation4 + $0x44] sm:$0xf]
    %v185 = vld [vmem:[#allocation4 + $0x48] sm:$0xf]
    %v186 = vld [vmem:[#allocation4 + $0x4c] sm:$0xf]
    %v187 = vld [vmem:[#allocation4 + $0x50] sm:$0xf]
    %v188 = vld [vmem:[#allocation4 + $0x54] sm:$0xf]
    %v189 = vld [vmem:[#allocation4 + $0x58] sm:$0xf]
    %v190 = vld [vmem:[#allocation4 + $0x5c] sm:$0xf]
    %v191 = vld [vmem:[#allocation4 + $0x60] sm:$0xf]
    %v192 = vld [vmem:[#allocation4 + $0x64] sm:$0xf]
    %v193 = vld [vmem:[#allocation4 + $0x68] sm:$0xf]
    %v194 = vld [vmem:[#allocation4 + $0x6c] sm:$0xf]
    %v195 = vld [vmem:[#allocation4 + $0x70] sm:$0xf]
    %v196 = vld [vmem:[#allocation4 + $0x74] sm:$0xf]
    %v197 = vld [vmem:[#allocation4 + $0x78] sm:$0xf]
    %v198 = vld [vmem:[#allocation4 + $0x7c] sm:$0xf]
    %v199 = vld [vmem:[#allocation4 + $0x80] sm:$0xf]
    %v200 = vld [vmem:[#allocation4 + $0x84] sm:$0xf]
    %v201 = vld [vmem:[#allocation4 + $0x88] sm:$0xf]
    %v202 = vld [vmem:[#allocation4 + $0x8c] sm:$0xf]
    %v203 = vld [vmem:[#allocation4 + $0x90] sm:$0xf]
    %v204 = vld [vmem:[#allocation4 + $0x94] sm:$0xf]
    %v205 = vld [vmem:[#allocation4 + $0x98] sm:$0xf]
    %v206 = vld [vmem:[#allocation4 + $0x9c] sm:$0xf]
    %v207 = vld [vmem:[#allocation4 + $0xa0] sm:$0xf]
    %v208 = vld [vmem:[#allocation4 + $0xa4] sm:$0xf]
    %v209 = vld [vmem:[#allocation4 + $0xa8] sm:$0xf]
    %v210 = vld [vmem:[#allocation4 + $0xac] sm:$0xf]
    %v211 = vld [vmem:[#allocation4 + $0xb0] sm:$0xf]
    %v212 = vld [vmem:[#allocation4 + $0xb4] sm:$0xf]
    %v213 = vld [vmem:[#allocation4 + $0xb8] sm:$0xf]
    %v214 = vld [vmem:[#allocation4 + $0xbc] sm:$0xf]
    %v215 = vld [vmem:[%s2] sm:$0x1]
    %v217 = vlaneseq
    %v218 = vshrl.u32 %v217, 7
    %v219 = vsub.s32 0, %v218
    %v220 = vrot.slane %v215, %v219
    %v222 = vpack.c.b16 %v164, %v161
    %v223 = vpack.c.b16 %v165, %v162
    %v224 = vpack.c.b16 %v166, %v163
    %v276 = vunpack.c.l.b16 %v167
    %v277 = vunpack.c.l.b16 %v168
    %v278 = vunpack.c.l.b16 %v169
    %v279 = vunpack.c.l.b16 %v170
    %v280 = vunpack.c.l.b16 %v171
    %v281 = vunpack.c.l.b16 %v172
    %v282 = vunpack.c.l.b16 %v173
    %v283 = vunpack.c.l.b16 %v174
    %v284 = vunpack.c.l.b16 %v175
    %v285 = vunpack.c.l.b16 %v176
    %v286 = vunpack.c.l.b16 %v177
    %v287 = vunpack.c.l.b16 %v178
    %v288 = vunpack.c.l.b16 %v179
    %v289 = vunpack.c.l.b16 %v180
    %v290 = vunpack.c.l.b16 %v181
    %v291 = vunpack.c.l.b16 %v182
    %v292 = vunpack.c.l.b16 %v183
    %v293 = vunpack.c.l.b16 %v184
    %v294 = vunpack.c.l.b16 %v185
    %v295 = vunpack.c.l.b16 %v186
    %v296 = vunpack.c.l.b16 %v187
    %v297 = vunpack.c.l.b16 %v188
    %v298 = vunpack.c.l.b16 %v189
    %v299 = vunpack.c.l.b16 %v190
    %v300 = vunpack.c.l.b16 %v191
    %v301 = vunpack.c.l.b16 %v192
    %v302 = vunpack.c.l.b16 %v193
    %v303 = vunpack.c.l.b16 %v194
    %v304 = vunpack.c.l.b16 %v195
    %v305 = vunpack.c.l.b16 %v196
    %v306 = vunpack.c.l.b16 %v197
    %v307 = vunpack.c.l.b16 %v198
    %v308 = vunpack.c.l.b16 %v199
    %v309 = vunpack.c.l.b16 %v200
    %v310 = vunpack.c.l.b16 %v201
    %v311 = vunpack.c.l.b16 %v202
    %v312 = vunpack.c.l.b16 %v203
    %v313 = vunpack.c.l.b16 %v204
    %v314 = vunpack.c.l.b16 %v205
    %v315 = vunpack.c.l.b16 %v206
    %v316 = vunpack.c.l.b16 %v207
    %v317 = vunpack.c.l.b16 %v208
    %v318 = vunpack.c.l.b16 %v209
    %v319 = vunpack.c.l.b16 %v210
    %v320 = vunpack.c.l.b16 %v211
    %v321 = vunpack.c.l.b16 %v212
    %v322 = vunpack.c.l.b16 %v213
    %v323 = vunpack.c.l.b16 %v214
    %v324 = vpack.c.b16 %v277, %v276
    %v325 = vpack.c.b16 %v279, %v278
    %v326 = vpack.c.b16 %v281, %v280
    %v327 = vpack.c.b16 %v283, %v282
    %v328 = vpack.c.b16 %v285, %v284
    %v329 = vpack.c.b16 %v287, %v286
    %v330 = vpack.c.b16 %v289, %v288
    %v331 = vpack.c.b16 %v291, %v290
    %v332 = vpack.c.b16 %v293, %v292
    %v333 = vpack.c.b16 %v295, %v294
    %v334 = vpack.c.b16 %v297, %v296
    %v335 = vpack.c.b16 %v299, %v298
    %v336 = vpack.c.b16 %v301, %v300
    %v337 = vpack.c.b16 %v303, %v302
    %v338 = vpack.c.b16 %v305, %v304
    %v339 = vpack.c.b16 %v307, %v306
    %v340 = vpack.c.b16 %v309, %v308
    %v341 = vpack.c.b16 %v311, %v310
    %v342 = vpack.c.b16 %v313, %v312
    %v343 = vpack.c.b16 %v315, %v314
    %v344 = vpack.c.b16 %v317, %v316
    %v345 = vpack.c.b16 %v319, %v318
    %v346 = vpack.c.b16 %v321, %v320
    %v347 = vpack.c.b16 %v323, %v322
    %372 = vmatprep.subr.bf16.mxu0 0
    %373 = vmatpush1.bf16.msra.mxu0 %v331
    %374 = vmatprep.subr.bf16.mxu0 0
    %375 = vmatpush1.bf16.msra.mxu0 %v330
    %376 = vmatprep.subr.bf16.mxu0 0
    %377 = vmatpush1.bf16.msra.mxu0 %v329
    %378 = vmatprep.subr.bf16.mxu0 0
    %379 = vmatpush1.bf16.msra.mxu0 %v328
    %380 = vmatprep.subr.bf16.mxu0 0
    %381 = vmatpush1.bf16.msra.mxu0 %v327
    %382 = vmatprep.subr.bf16.mxu0 0
    %383 = vmatpush1.bf16.msra.mxu0 %v326
    %384 = vmatprep.subr.bf16.mxu0 0
    %385 = vmatpush1.bf16.msra.mxu0 %v325
    %386 = vmatprep.subr.bf16.mxu0 0
    %387 = vmatpush1.bf16.msra.mxu0 %v324
    %388 = vmatprep.subr.bf16.mxu0 0
    %389 = vmatpush2.bf16.msra.mxu0 %v339
    %390 = vmatprep.subr.bf16.mxu0 0
    %391 = vmatpush2.bf16.msra.mxu0 %v338
    %392 = vmatprep.subr.bf16.mxu0 0
    %393 = vmatpush2.bf16.msra.mxu0 %v337
    %394 = vmatprep.subr.bf16.mxu0 0
    %395 = vmatpush2.bf16.msra.mxu0 %v336
    %396 = vmatprep.subr.bf16.mxu0 0
    %397 = vmatpush2.bf16.msra.mxu0 %v335
    %398 = vmatprep.subr.bf16.mxu0 0
    %399 = vmatpush2.bf16.msra.mxu0 %v334
    %400 = vmatprep.subr.bf16.mxu0 0
    %401 = vmatpush2.bf16.msra.mxu0 %v333
    %402 = vmatprep.subr.bf16.mxu0 0
    %403 = vmatpush2.bf16.msra.mxu0 %v332
    %404 = vmatprep.mubr.bf16.mxu0 %v223
    %405 = vmatmul.mubr.bf16.gmra.mxu0 %v222
    %v406 = vpop.f32.mrf.mxu0
    %v407 = vadd.f32 %v220, %v406
    %v408 = vpop.f32.mrf.mxu0
    %v409 = vpop.f32.mrf.mxu0
    %v410 = vadd.f32 %v220, %v409
    %v411 = vpop.f32.mrf.mxu0
    %412 = vdwg.mxu0
    %413 = vmatprep.subr.bf16.mxu0 0
    %414 = vmatpush1.bf16.msra.mxu0 %v347
    %415 = vmatprep.subr.bf16.mxu0 0
    %416 = vmatpush1.bf16.msra.mxu0 %v346
    %417 = vmatprep.subr.bf16.mxu0 0
    %418 = vmatpush1.bf16.msra.mxu0 %v345
    %419 = vmatprep.subr.bf16.mxu0 0
    %420 = vmatpush1.bf16.msra.mxu0 %v344
    %421 = vmatprep.subr.bf16.mxu0 0
    %422 = vmatpush1.bf16.msra.mxu0 %v343
    %423 = vmatprep.subr.bf16.mxu0 0
    %424 = vmatpush1.bf16.msra.mxu0 %v342
    %425 = vmatprep.subr.bf16.mxu0 0
    %426 = vmatpush1.bf16.msra.mxu0 %v341
    %427 = vmatprep.subr.bf16.mxu0 0
    %428 = vmatpush1.bf16.msra.mxu0 %v340
    %429 = vmatprep.subr.bf16.mxu0 0
    %430 = vmatpush2.bf16.msra.mxu0 0
    %431 = vmatprep.subr.bf16.mxu0 0
    %432 = vmatpush2.bf16.msra.mxu0 0
    %433 = vmatprep.subr.bf16.mxu0 0
    %434 = vmatpush2.bf16.msra.mxu0 0
    %435 = vmatprep.subr.bf16.mxu0 0
    %436 = vmatpush2.bf16.msra.mxu0 0
    %437 = vmatprep.subr.bf16.mxu0 0
    %438 = vmatpush2.bf16.msra.mxu0 0
    %439 = vmatprep.subr.bf16.mxu0 0
    %440 = vmatpush2.bf16.msra.mxu0 0
    %441 = vmatprep.subr.bf16.mxu0 0
    %442 = vmatpush2.bf16.msra.mxu0 0
    %443 = vmatprep.subr.bf16.mxu0 0
    %444 = vmatpush2.bf16.msra.mxu0 0
    %445 = vmatprep.mubr.bf16.mxu0 0
    %446 = vmatmul.mubr.bf16.gmra.mxu0 %v224
    %v447 = vpop.f32.mrf.mxu0
    %v448 = vadd.f32 %v407, %v447
    %v449 = vpop.f32.mrf.mxu0
    %v450 = vpop.f32.mrf.mxu0
    %v451 = vadd.f32 %v410, %v450
    %v452 = vpop.f32.mrf.mxu0
    %453 = vdwg.mxu0
    %v454 = vmax.f32 %v448, 0.0
    %v455 = vmax.f32 %v451, 0.0
    %v456 = vpack.c.bf16 %v455, %v454
    %v458 = vunpack.c.l.b16 %v456
    %v459 = vunpack.c.h.b16 %v456
    %v460 = vpack.c.b16 %v458, %v458
    %v461 = vpack.c.b16 %v459, %v459
    %462 = vst [vmem:[#allocation3] sm:$0x1] 0
    %463 = vst [vmem:[#allocation3 + $0x8] sm:$0x1] 0
    %v464 = vrot.slane %v460, 7
    %v465 = vrot.slane %v464, 4
    %v466 = vrot.slane %v461, 7
    %v467 = vrot.slane %v466, 4
    %472 = vst [vmem:[#allocation3] sm:$0xe] %v464
    %473 = vst [vmem:[#allocation3 + $0x4] sm:$0x1] %v465
    %474 = vst [vmem:[#allocation3 + $0x8] sm:$0xe] %v466
    %475 = vst [vmem:[#allocation3 + $0xc] sm:$0x1] %v467
    %v476 = vld [vmem:[#allocation3] sm:$0xf]
    %v477 = vld [vmem:[#allocation3 + $0x8] sm:$0xf]
    %v478 = vld [vmem:[#allocation3] sm:$0xf]
    %v479 = vld [vmem:[#allocation3 + $0x4] sm:$0x1]
    %v480 = vld [vmem:[#allocation3 + $0x8] sm:$0xf]
    %v481 = vld [vmem:[#allocation3 + $0xc] sm:$0x1]
    %v482 = vld [vmem:[#allocation3] sm:$0xe]
    %v483 = vld [vmem:[#allocation3 + $0x8] sm:$0xe]
    %v488 = vunpack.c.l.b16 %v478
    %v489 = vunpack.c.l.b16 %v479
    %v490 = vunpack.c.l.b16 %v480
    %v491 = vunpack.c.l.b16 %v481
    %v492 = vpack.c.b16 %v489, %v488
    %v493 = vpack.c.b16 %v491, %v490
    %v495 = vshrl.u32 %v492, 16
    %v497 = vshll.u32 %v492, 16
    %v499 = vrot.slane %v497, 1
    %v500 = vor.u32 %v495, %v499
    %v502 = vshrl.u32 %v493, 16
    %v504 = vshll.u32 %v493, 16
    %v506 = vrot.slane %v504, 1
    %v507 = vor.u32 %v502, %v506
    %v510 = vunpack.c.l.b16 %v482
    %v511 = vunpack.c.l.b16 %v483
    %v512 = vpack.c.b16 %v489, %v510
    %v513 = vpack.c.b16 %v491, %v511
    %v514 = vrot.slane %v512, 1
    %v515 = vrot.slane %v513, 1
    %v518 = vunpack.c.l.b16 %v476
    %v519 = vunpack.c.l.b16 %v500
    %v520 = vunpack.c.l.b16 %v514
    %v521 = vunpack.c.l.b16 %v477
    %v522 = vunpack.c.l.b16 %v507
    %v523 = vunpack.c.l.b16 %v515
    %v524 = vld [vmem:[#allocation7] sm:$0xf]
    %v525 = vld [vmem:[#allocation7 + $0x4] sm:$0xf]
    %v526 = vld [vmem:[#allocation7 + $0x8] sm:$0xf]
    %v527 = vld [vmem:[#allocation7 + $0xc] sm:$0xf]
    %v528 = vld [vmem:[#allocation7 + $0x10] sm:$0xf]
    %v529 = vld [vmem:[#allocation7 + $0x14] sm:$0xf]
    %v530 = vld [vmem:[#allocation7 + $0x18] sm:$0xf]
    %v531 = vld [vmem:[#allocation7 + $0x1c] sm:$0xf]
    %v532 = vld [vmem:[#allocation7 + $0x20] sm:$0xf]
    %v533 = vld [vmem:[#allocation7 + $0x24] sm:$0xf]
    %v534 = vld [vmem:[#allocation7 + $0x28] sm:$0xf]
    %v535 = vld [vmem:[#allocation7 + $0x2c] sm:$0xf]
    %v536 = vld [vmem:[#allocation7 + $0x30] sm:$0xf]
    %v537 = vld [vmem:[#allocation7 + $0x34] sm:$0xf]
    %v538 = vld [vmem:[#allocation7 + $0x38] sm:$0xf]
    %v539 = vld [vmem:[#allocation7 + $0x3c] sm:$0xf]
    %v540 = vld [vmem:[#allocation7 + $0x40] sm:$0xf]
    %v541 = vld [vmem:[#allocation7 + $0x44] sm:$0xf]
    %v542 = vld [vmem:[#allocation7 + $0x48] sm:$0xf]
    %v543 = vld [vmem:[#allocation7 + $0x4c] sm:$0xf]
    %v544 = vld [vmem:[#allocation7 + $0x50] sm:$0xf]
    %v545 = vld [vmem:[#allocation7 + $0x54] sm:$0xf]
    %v546 = vld [vmem:[#allocation7 + $0x58] sm:$0xf]
    %v547 = vld [vmem:[#allocation7 + $0x5c] sm:$0xf]
    %v548 = vld [vmem:[#allocation7 + $0x60] sm:$0xf]
    %v549 = vld [vmem:[#allocation7 + $0x64] sm:$0xf]
    %v550 = vld [vmem:[#allocation7 + $0x68] sm:$0xf]
    %v551 = vld [vmem:[#allocation7 + $0x6c] sm:$0xf]
    %v552 = vld [vmem:[#allocation7 + $0x70] sm:$0xf]
    %v553 = vld [vmem:[#allocation7 + $0x74] sm:$0xf]
    %v554 = vld [vmem:[#allocation7 + $0x78] sm:$0xf]
    %v555 = vld [vmem:[#allocation7 + $0x7c] sm:$0xf]
    %v556 = vld [vmem:[#allocation7 + $0x80] sm:$0xf]
    %v557 = vld [vmem:[#allocation7 + $0x84] sm:$0xf]
    %v558 = vld [vmem:[#allocation7 + $0x88] sm:$0xf]
    %v559 = vld [vmem:[#allocation7 + $0x8c] sm:$0xf]
    %v560 = vld [vmem:[#allocation7 + $0x90] sm:$0xf]
    %v561 = vld [vmem:[#allocation7 + $0x94] sm:$0xf]
    %v562 = vld [vmem:[#allocation7 + $0x98] sm:$0xf]
    %v563 = vld [vmem:[#allocation7 + $0x9c] sm:$0xf]
    %v564 = vld [vmem:[#allocation7 + $0xa0] sm:$0xf]
    %v565 = vld [vmem:[#allocation7 + $0xa4] sm:$0xf]
    %v566 = vld [vmem:[#allocation7 + $0xa8] sm:$0xf]
    %v567 = vld [vmem:[#allocation7 + $0xac] sm:$0xf]
    %v568 = vld [vmem:[#allocation7 + $0xb0] sm:$0xf]
    %v569 = vld [vmem:[#allocation7 + $0xb4] sm:$0xf]
    %v570 = vld [vmem:[#allocation7 + $0xb8] sm:$0xf]
    %v571 = vld [vmem:[#allocation7 + $0xbc] sm:$0xf]
    %v572 = vld [vmem:[%s4] sm:$0x1]
    %v574 = vlaneseq
    %v575 = vshrl.u32 %v574, 7
    %v576 = vsub.s32 0, %v575
    %v577 = vrot.slane %v572, %v576
    %v579 = vpack.c.b16 %v521, %v518
    %v580 = vpack.c.b16 %v522, %v519
    %v581 = vpack.c.b16 %v523, %v520
    %v633 = vunpack.c.l.b16 %v524
    %v634 = vunpack.c.l.b16 %v525
    %v635 = vunpack.c.l.b16 %v526
    %v636 = vunpack.c.l.b16 %v527
    %v637 = vunpack.c.l.b16 %v528
    %v638 = vunpack.c.l.b16 %v529
    %v639 = vunpack.c.l.b16 %v530
    %v640 = vunpack.c.l.b16 %v531
    %v641 = vunpack.c.l.b16 %v532
    %v642 = vunpack.c.l.b16 %v533
    %v643 = vunpack.c.l.b16 %v534
    %v644 = vunpack.c.l.b16 %v535
    %v645 = vunpack.c.l.b16 %v536
    %v646 = vunpack.c.l.b16 %v537
    %v647 = vunpack.c.l.b16 %v538
    %v648 = vunpack.c.l.b16 %v539
    %v649 = vunpack.c.l.b16 %v540
    %v650 = vunpack.c.l.b16 %v541
    %v651 = vunpack.c.l.b16 %v542
    %v652 = vunpack.c.l.b16 %v543
    %v653 = vunpack.c.l.b16 %v544
    %v654 = vunpack.c.l.b16 %v545
    %v655 = vunpack.c.l.b16 %v546
    %v656 = vunpack.c.l.b16 %v547
    %v657 = vunpack.c.l.b16 %v548
    %v658 = vunpack.c.l.b16 %v549
    %v659 = vunpack.c.l.b16 %v550
    %v660 = vunpack.c.l.b16 %v551
    %v661 = vunpack.c.l.b16 %v552
    %v662 = vunpack.c.l.b16 %v553
    %v663 = vunpack.c.l.b16 %v554
    %v664 = vunpack.c.l.b16 %v555
    %v665 = vunpack.c.l.b16 %v556
    %v666 = vunpack.c.l.b16 %v557
    %v667 = vunpack.c.l.b16 %v558
    %v668 = vunpack.c.l.b16 %v559
    %v669 = vunpack.c.l.b16 %v560
    %v670 = vunpack.c.l.b16 %v561
    %v671 = vunpack.c.l.b16 %v562
    %v672 = vunpack.c.l.b16 %v563
    %v673 = vunpack.c.l.b16 %v564
    %v674 = vunpack.c.l.b16 %v565
    %v675 = vunpack.c.l.b16 %v566
    %v676 = vunpack.c.l.b16 %v567
    %v677 = vunpack.c.l.b16 %v568
    %v678 = vunpack.c.l.b16 %v569
    %v679 = vunpack.c.l.b16 %v570
    %v680 = vunpack.c.l.b16 %v571
    %v681 = vpack.c.b16 %v634, %v633
    %v682 = vpack.c.b16 %v636, %v635
    %v683 = vpack.c.b16 %v638, %v637
    %v684 = vpack.c.b16 %v640, %v639
    %v685 = vpack.c.b16 %v642, %v641
    %v686 = vpack.c.b16 %v644, %v643
    %v687 = vpack.c.b16 %v646, %v645
    %v688 = vpack.c.b16 %v648, %v647
    %v689 = vpack.c.b16 %v650, %v649
    %v690 = vpack.c.b16 %v652, %v651
    %v691 = vpack.c.b16 %v654, %v653
    %v692 = vpack.c.b16 %v656, %v655
    %v693 = vpack.c.b16 %v658, %v657
    %v694 = vpack.c.b16 %v660, %v659
    %v695 = vpack.c.b16 %v662, %v661
    %v696 = vpack.c.b16 %v664, %v663
    %v697 = vpack.c.b16 %v666, %v665
    %v698 = vpack.c.b16 %v668, %v667
    %v699 = vpack.c.b16 %v670, %v669
    %v700 = vpack.c.b16 %v672, %v671
    %v701 = vpack.c.b16 %v674, %v673
    %v702 = vpack.c.b16 %v676, %v675
    %v703 = vpack.c.b16 %v678, %v677
    %v704 = vpack.c.b16 %v680, %v679
    %729 = vmatprep.subr.bf16.mxu0 0
    %730 = vmatpush1.bf16.msra.mxu0 %v688
    %731 = vmatprep.subr.bf16.mxu0 0
    %732 = vmatpush1.bf16.msra.mxu0 %v687
    %733 = vmatprep.subr.bf16.mxu0 0
    %734 = vmatpush1.bf16.msra.mxu0 %v686
    %735 = vmatprep.subr.bf16.mxu0 0
    %736 = vmatpush1.bf16.msra.mxu0 %v685
    %737 = vmatprep.subr.bf16.mxu0 0
    %738 = vmatpush1.bf16.msra.mxu0 %v684
    %739 = vmatprep.subr.bf16.mxu0 0
    %740 = vmatpush1.bf16.msra.mxu0 %v683
    %741 = vmatprep.subr.bf16.mxu0 0
    %742 = vmatpush1.bf16.msra.mxu0 %v682
    %743 = vmatprep.subr.bf16.mxu0 0
    %744 = vmatpush1.bf16.msra.mxu0 %v681
    %745 = vmatprep.subr.bf16.mxu0 0
    %746 = vmatpush2.bf16.msra.mxu0 %v696
    %747 = vmatprep.subr.bf16.mxu0 0
    %748 = vmatpush2.bf16.msra.mxu0 %v695
    %749 = vmatprep.subr.bf16.mxu0 0
    %750 = vmatpush2.bf16.msra.mxu0 %v694
    %751 = vmatprep.subr.bf16.mxu0 0
    %752 = vmatpush2.bf16.msra.mxu0 %v693
    %753 = vmatprep.subr.bf16.mxu0 0
    %754 = vmatpush2.bf16.msra.mxu0 %v692
    %755 = vmatprep.subr.bf16.mxu0 0
    %756 = vmatpush2.bf16.msra.mxu0 %v691
    %757 = vmatprep.subr.bf16.mxu0 0
    %758 = vmatpush2.bf16.msra.mxu0 %v690
    %759 = vmatprep.subr.bf16.mxu0 0
    %760 = vmatpush2.bf16.msra.mxu0 %v689
    %761 = vmatprep.mubr.bf16.mxu0 %v580
    %762 = vmatmul.mubr.bf16.gmra.mxu0 %v579
    %v763 = vpop.f32.mrf.mxu0
    %v764 = vadd.f32 %v577, %v763
    %v765 = vpop.f32.mrf.mxu0
    %v766 = vpop.f32.mrf.mxu0
    %v767 = vadd.f32 %v577, %v766
    %v768 = vpop.f32.mrf.mxu0
    %769 = vdwg.mxu0
    %770 = vmatprep.subr.bf16.mxu0 0
    %771 = vmatpush1.bf16.msra.mxu0 %v704
    %772 = vmatprep.subr.bf16.mxu0 0
    %773 = vmatpush1.bf16.msra.mxu0 %v703
    %774 = vmatprep.subr.bf16.mxu0 0
    %775 = vmatpush1.bf16.msra.mxu0 %v702
    %776 = vmatprep.subr.bf16.mxu0 0
    %777 = vmatpush1.bf16.msra.mxu0 %v701
    %778 = vmatprep.subr.bf16.mxu0 0
    %779 = vmatpush1.bf16.msra.mxu0 %v700
    %780 = vmatprep.subr.bf16.mxu0 0
    %781 = vmatpush1.bf16.msra.mxu0 %v699
    %782 = vmatprep.subr.bf16.mxu0 0
    %783 = vmatpush1.bf16.msra.mxu0 %v698
    %784 = vmatprep.subr.bf16.mxu0 0
    %785 = vmatpush1.bf16.msra.mxu0 %v697
    %786 = vmatprep.subr.bf16.mxu0 0
    %787 = vmatpush2.bf16.msra.mxu0 0
    %788 = vmatprep.subr.bf16.mxu0 0
    %789 = vmatpush2.bf16.msra.mxu0 0
    %790 = vmatprep.subr.bf16.mxu0 0
    %791 = vmatpush2.bf16.msra.mxu0 0
    %792 = vmatprep.subr.bf16.mxu0 0
    %793 = vmatpush2.bf16.msra.mxu0 0
    %794 = vmatprep.subr.bf16.mxu0 0
    %795 = vmatpush2.bf16.msra.mxu0 0
    %796 = vmatprep.subr.bf16.mxu0 0
    %797 = vmatpush2.bf16.msra.mxu0 0
    %798 = vmatprep.subr.bf16.mxu0 0
    %799 = vmatpush2.bf16.msra.mxu0 0
    %800 = vmatprep.subr.bf16.mxu0 0
    %801 = vmatpush2.bf16.msra.mxu0 0
    %802 = vmatprep.mubr.bf16.mxu0 0
    %803 = vmatmul.mubr.bf16.gmra.mxu0 %v581
    %v804 = vpop.f32.mrf.mxu0
    %v805 = vadd.f32 %v764, %v804
    %v806 = vpop.f32.mrf.mxu0
    %v807 = vpop.f32.mrf.mxu0
    %v808 = vadd.f32 %v767, %v807
    %v809 = vpop.f32.mrf.mxu0
    %810 = vdwg.mxu0
    %v811 = vld [vmem:[%s5] sm:$0xf]
    %v812 = vld [vmem:[%s5 + $0x4] sm:$0xf]
    %v813 = vld [vmem:[%s5 + $0x8] sm:$0xf]
    %v814 = vld [vmem:[%s5 + $0xc] sm:$0xf]
    %v815 = vld [vmem:[%s5 + $0x10] sm:$0xf]
    %v816 = vld [vmem:[%s5 + $0x14] sm:$0xf]
    %v817 = vld [vmem:[%s5 + $0x18] sm:$0xf]
    %v818 = vld [vmem:[%s5 + $0x1c] sm:$0xf]
    %v819 = vld [vmem:[%s5 + $0x20] sm:$0xf]
    %v820 = vld [vmem:[%s5 + $0x24] sm:$0xf]
    %v821 = vld [vmem:[%s5 + $0x28] sm:$0xf]
    %v822 = vld [vmem:[%s5 + $0x2c] sm:$0xf]
    %v823 = vld [vmem:[%s5 + $0x30] sm:$0xf]
    %v824 = vld [vmem:[%s5 + $0x34] sm:$0xf]
    %v825 = vld [vmem:[%s5 + $0x38] sm:$0xf]
    %v826 = vld [vmem:[%s5 + $0x3c] sm:$0xf]
    %v827 = vld [vmem:[%s6] sm:$0x1]
    %v829 = vlaneseq
    %v830 = vshrl.u32 %v829, 7
    %v831 = vsub.s32 0, %v830
    %v832 = vrot.slane %v827, %v831
    %v834 = vunpack.c.l.b16 %v101
    %v835 = vunpack.c.l.b16 %v102
    %v836 = vpack.c.b16 %v835, %v834
    %v854 = vunpack.c.l.b16 %v811
    %v855 = vunpack.c.l.b16 %v812
    %v856 = vunpack.c.l.b16 %v813
    %v857 = vunpack.c.l.b16 %v814
    %v858 = vunpack.c.l.b16 %v815
    %v859 = vunpack.c.l.b16 %v816
    %v860 = vunpack.c.l.b16 %v817
    %v861 = vunpack.c.l.b16 %v818
    %v862 = vunpack.c.l.b16 %v819
    %v863 = vunpack.c.l.b16 %v820
    %v864 = vunpack.c.l.b16 %v821
    %v865 = vunpack.c.l.b16 %v822
    %v866 = vunpack.c.l.b16 %v823
    %v867 = vunpack.c.l.b16 %v824
    %v868 = vunpack.c.l.b16 %v825
    %v869 = vunpack.c.l.b16 %v826
    %v870 = vpack.c.b16 %v855, %v854
    %v871 = vpack.c.b16 %v857, %v856
    %v872 = vpack.c.b16 %v859, %v858
    %v873 = vpack.c.b16 %v861, %v860
    %v874 = vpack.c.b16 %v863, %v862
    %v875 = vpack.c.b16 %v865, %v864
    %v876 = vpack.c.b16 %v867, %v866
    %v877 = vpack.c.b16 %v869, %v868
    %886 = vmatprep.subr.bf16.mxu0 0
    %887 = vmatpush1.bf16.msra.mxu0 %v877
    %888 = vmatprep.subr.bf16.mxu0 0
    %889 = vmatpush1.bf16.msra.mxu0 %v876
    %890 = vmatprep.subr.bf16.mxu0 0
    %891 = vmatpush1.bf16.msra.mxu0 %v875
    %892 = vmatprep.subr.bf16.mxu0 0
    %893 = vmatpush1.bf16.msra.mxu0 %v874
    %894 = vmatprep.subr.bf16.mxu0 0
    %895 = vmatpush1.bf16.msra.mxu0 %v873
    %896 = vmatprep.subr.bf16.mxu0 0
    %897 = vmatpush1.bf16.msra.mxu0 %v872
    %898 = vmatprep.subr.bf16.mxu0 0
    %899 = vmatpush1.bf16.msra.mxu0 %v871
    %900 = vmatprep.subr.bf16.mxu0 0
    %901 = vmatpush1.bf16.msra.mxu0 %v870
    %902 = vmatprep.subr.bf16.mxu0 0
    %903 = vmatpush2.bf16.msra.mxu0 0
    %904 = vmatprep.subr.bf16.mxu0 0
    %905 = vmatpush2.bf16.msra.mxu0 0
    %906 = vmatprep.subr.bf16.mxu0 0
    %907 = vmatpush2.bf16.msra.mxu0 0
    %908 = vmatprep.subr.bf16.mxu0 0
    %909 = vmatpush2.bf16.msra.mxu0 0
    %910 = vmatprep.subr.bf16.mxu0 0
    %911 = vmatpush2.bf16.msra.mxu0 0
    %912 = vmatprep.subr.bf16.mxu0 0
    %913 = vmatpush2.bf16.msra.mxu0 0
    %914 = vmatprep.subr.bf16.mxu0 0
    %915 = vmatpush2.bf16.msra.mxu0 0
    %916 = vmatprep.subr.bf16.mxu0 0
    %917 = vmatpush2.bf16.msra.mxu0 0
    %918 = vmatprep.mubr.bf16.mxu0 0
    %919 = vmatmul.mubr.bf16.gmra.mxu0 %v836
    %v920 = vpop.f32.mrf.mxu0
    %v921 = vadd.f32 %v832, %v920
    %v922 = vpop.f32.mrf.mxu0
    %v923 = vpop.f32.mrf.mxu0
    %v924 = vadd.f32 %v832, %v923
    %v925 = vpop.f32.mrf.mxu0
    %926 = vdwg.mxu0
    %v927 = vadd.f32 %v805, %v921
    %v928 = vadd.f32 %v808, %v924
    %v929 = vmax.f32 %v927, 0.0
    %v930 = vmax.f32 %v928, 0.0
    %v931 = vpack.c.bf16 %v929, %v929
    %v932 = vpack.c.bf16 %v930, %v930
    %933 = vst [vmem:[#allocation2] sm:$0x3] 0
    %934 = vst [vmem:[#allocation2 + $0x8] sm:$0x3] 0
    %v937 = vunpack.c.l.b16 %v931
    %v938 = vunpack.c.l.b16 %v932
    %v939 = vpack.c.b16 %v937, %v937
    %v940 = vpack.c.b16 %v938, %v938
    %v941 = vrot.slane %v939, 6
    %v942 = vrot.slane %v941, 4
    %v943 = vrot.slane %v940, 6
    %v944 = vrot.slane %v943, 4
    %949 = vst [vmem:[#allocation2] sm:$0xc] %v941
    %950 = vst [vmem:[#allocation2 + $0x4] sm:$0x3] %v942
    %951 = vst [vmem:[#allocation2 + $0x8] sm:$0xc] %v943
    %952 = vst [vmem:[#allocation2 + $0xc] sm:$0x3] %v944
    %v953 = vld [vmem:[#allocation2] sm:$0xf]
    %v954 = vld [vmem:[#allocation2 + $0x8] sm:$0xf]
    %v955 = vld [vmem:[#allocation2] sm:$0xe]
    %v956 = vld [vmem:[#allocation2 + $0x4] sm:$0x1]
    %v957 = vld [vmem:[#allocation2 + $0x8] sm:$0xe]
    %v958 = vld [vmem:[#allocation2 + $0xc] sm:$0x1]
    %v959 = vld [vmem:[#allocation2] sm:$0xc]
    %v960 = vld [vmem:[#allocation2 + $0x4] sm:$0x3]
    %v961 = vld [vmem:[#allocation2 + $0x8] sm:$0xc]
    %v962 = vld [vmem:[#allocation2 + $0xc] sm:$0x3]
    %v967 = vunpack.c.l.b16 %v955
    %v968 = vunpack.c.l.b16 %v956
    %v969 = vunpack.c.l.b16 %v957
    %v970 = vunpack.c.l.b16 %v958
    %v971 = vpack.c.b16 %v968, %v967
    %v972 = vpack.c.b16 %v970, %v969
    %v973 = vrot.slane %v971, 1
    %v974 = vrot.slane %v972, 1
    %v979 = vunpack.c.l.b16 %v959
    %v980 = vunpack.c.l.b16 %v960
    %v981 = vunpack.c.l.b16 %v961
    %v982 = vunpack.c.l.b16 %v962
    %v983 = vpack.c.b16 %v980, %v979
    %v984 = vpack.c.b16 %v982, %v981
    %v985 = vrot.slane %v983, 2
    %v986 = vrot.slane %v984, 2
    %v989 = vunpack.c.l.b16 %v953
    %v990 = vunpack.c.l.b16 %v973
    %v991 = vunpack.c.l.b16 %v985
    %v992 = vunpack.c.l.b16 %v954
    %v993 = vunpack.c.l.b16 %v974
    %v994 = vunpack.c.l.b16 %v986
    %v995 = vld [vmem:[#allocation9] sm:$0xf]
    %v996 = vld [vmem:[#allocation9 + $0x4] sm:$0xf]
    %v997 = vld [vmem:[#allocation9 + $0x8] sm:$0xf]
    %v998 = vld [vmem:[#allocation9 + $0xc] sm:$0xf]
    %v999 = vld [vmem:[#allocation9 + $0x10] sm:$0xf]
    %v1000 = vld [vmem:[#allocation9 + $0x14] sm:$0xf]
    %v1001 = vld [vmem:[#allocation9 + $0x18] sm:$0xf]
    %v1002 = vld [vmem:[#allocation9 + $0x1c] sm:$0xf]
    %v1003 = vld [vmem:[#allocation9 + $0x20] sm:$0xf]
    %v1004 = vld [vmem:[#allocation9 + $0x24] sm:$0xf]
    %v1005 = vld [vmem:[#allocation9 + $0x28] sm:$0xf]
    %v1006 = vld [vmem:[#allocation9 + $0x2c] sm:$0xf]
    %v1007 = vld [vmem:[#allocation9 + $0x30] sm:$0xf]
    %v1008 = vld [vmem:[#allocation9 + $0x34] sm:$0xf]
    %v1009 = vld [vmem:[#allocation9 + $0x38] sm:$0xf]
    %v1010 = vld [vmem:[#allocation9 + $0x3c] sm:$0xf]
    %v1011 = vld [vmem:[#allocation9 + $0x40] sm:$0xf]
    %v1012 = vld [vmem:[#allocation9 + $0x44] sm:$0xf]
    %v1013 = vld [vmem:[#allocation9 + $0x48] sm:$0xf]
    %v1014 = vld [vmem:[#allocation9 + $0x4c] sm:$0xf]
    %v1015 = vld [vmem:[#allocation9 + $0x50] sm:$0xf]
    %v1016 = vld [vmem:[#allocation9 + $0x54] sm:$0xf]
    %v1017 = vld [vmem:[#allocation9 + $0x58] sm:$0xf]
    %v1018 = vld [vmem:[#allocation9 + $0x5c] sm:$0xf]
    %v1019 = vld [vmem:[#allocation9 + $0x60] sm:$0xf]
    %v1020 = vld [vmem:[#allocation9 + $0x64] sm:$0xf]
    %v1021 = vld [vmem:[#allocation9 + $0x68] sm:$0xf]
    %v1022 = vld [vmem:[#allocation9 + $0x6c] sm:$0xf]
    %v1023 = vld [vmem:[#allocation9 + $0x70] sm:$0xf]
    %v1024 = vld [vmem:[#allocation9 + $0x74] sm:$0xf]
    %v1025 = vld [vmem:[#allocation9 + $0x78] sm:$0xf]
    %v1026 = vld [vmem:[#allocation9 + $0x7c] sm:$0xf]
    %v1027 = vld [vmem:[#allocation9 + $0x80] sm:$0xf]
    %v1028 = vld [vmem:[#allocation9 + $0x84] sm:$0xf]
    %v1029 = vld [vmem:[#allocation9 + $0x88] sm:$0xf]
    %v1030 = vld [vmem:[#allocation9 + $0x8c] sm:$0xf]
    %v1031 = vld [vmem:[#allocation9 + $0x90] sm:$0xf]
    %v1032 = vld [vmem:[#allocation9 + $0x94] sm:$0xf]
    %v1033 = vld [vmem:[#allocation9 + $0x98] sm:$0xf]
    %v1034 = vld [vmem:[#allocation9 + $0x9c] sm:$0xf]
    %v1035 = vld [vmem:[#allocation9 + $0xa0] sm:$0xf]
    %v1036 = vld [vmem:[#allocation9 + $0xa4] sm:$0xf]
    %v1037 = vld [vmem:[#allocation9 + $0xa8] sm:$0xf]
    %v1038 = vld [vmem:[#allocation9 + $0xac] sm:$0xf]
    %v1039 = vld [vmem:[#allocation9 + $0xb0] sm:$0xf]
    %v1040 = vld [vmem:[#allocation9 + $0xb4] sm:$0xf]
    %v1041 = vld [vmem:[#allocation9 + $0xb8] sm:$0xf]
    %v1042 = vld [vmem:[#allocation9 + $0xbc] sm:$0xf]
    %v1043 = vld [vmem:[%s8] sm:$0x1]
    %v1045 = vlaneseq
    %v1046 = vshrl.u32 %v1045, 7
    %v1047 = vsub.s32 0, %v1046
    %v1048 = vrot.slane %v1043, %v1047
    %v1050 = vpack.c.b16 %v992, %v989
    %v1051 = vpack.c.b16 %v993, %v990
    %v1052 = vpack.c.b16 %v994, %v991
    %v1104 = vunpack.c.l.b16 %v995
    %v1105 = vunpack.c.l.b16 %v996
    %v1106 = vunpack.c.l.b16 %v997
    %v1107 = vunpack.c.l.b16 %v998
    %v1108 = vunpack.c.l.b16 %v999
    %v1109 = vunpack.c.l.b16 %v1000
    %v1110 = vunpack.c.l.b16 %v1001
    %v1111 = vunpack.c.l.b16 %v1002
    %v1112 = vunpack.c.l.b16 %v1003
    %v1113 = vunpack.c.l.b16 %v1004
    %v1114 = vunpack.c.l.b16 %v1005
    %v1115 = vunpack.c.l.b16 %v1006
    %v1116 = vunpack.c.l.b16 %v1007
    %v1117 = vunpack.c.l.b16 %v1008
    %v1118 = vunpack.c.l.b16 %v1009
    %v1119 = vunpack.c.l.b16 %v1010
    %v1120 = vunpack.c.l.b16 %v1011
    %v1121 = vunpack.c.l.b16 %v1012
    %v1122 = vunpack.c.l.b16 %v1013
    %v1123 = vunpack.c.l.b16 %v1014
    %v1124 = vunpack.c.l.b16 %v1015
    %v1125 = vunpack.c.l.b16 %v1016
    %v1126 = vunpack.c.l.b16 %v1017
    %v1127 = vunpack.c.l.b16 %v1018
    %v1128 = vunpack.c.l.b16 %v1019
    %v1129 = vunpack.c.l.b16 %v1020
    %v1130 = vunpack.c.l.b16 %v1021
    %v1131 = vunpack.c.l.b16 %v1022
    %v1132 = vunpack.c.l.b16 %v1023
    %v1133 = vunpack.c.l.b16 %v1024
    %v1134 = vunpack.c.l.b16 %v1025
    %v1135 = vunpack.c.l.b16 %v1026
    %v1136 = vunpack.c.l.b16 %v1027
    %v1137 = vunpack.c.l.b16 %v1028
    %v1138 = vunpack.c.l.b16 %v1029
    %v1139 = vunpack.c.l.b16 %v1030
    %v1140 = vunpack.c.l.b16 %v1031
    %v1141 = vunpack.c.l.b16 %v1032
    %v1142 = vunpack.c.l.b16 %v1033
    %v1143 = vunpack.c.l.b16 %v1034
    %v1144 = vunpack.c.l.b16 %v1035
    %v1145 = vunpack.c.l.b16 %v1036
    %v1146 = vunpack.c.l.b16 %v1037
    %v1147 = vunpack.c.l.b16 %v1038
    %v1148 = vunpack.c.l.b16 %v1039
    %v1149 = vunpack.c.l.b16 %v1040
    %v1150 = vunpack.c.l.b16 %v1041
    %v1151 = vunpack.c.l.b16 %v1042
    %v1152 = vpack.c.b16 %v1105, %v1104
    %v1153 = vpack.c.b16 %v1107, %v1106
    %v1154 = vpack.c.b16 %v1109, %v1108
    %v1155 = vpack.c.b16 %v1111, %v1110
    %v1156 = vpack.c.b16 %v1113, %v1112
    %v1157 = vpack.c.b16 %v1115, %v1114
    %v1158 = vpack.c.b16 %v1117, %v1116
    %v1159 = vpack.c.b16 %v1119, %v1118
    %v1160 = vpack.c.b16 %v1121, %v1120
    %v1161 = vpack.c.b16 %v1123, %v1122
    %v1162 = vpack.c.b16 %v1125, %v1124
    %v1163 = vpack.c.b16 %v1127, %v1126
    %v1164 = vpack.c.b16 %v1129, %v1128
    %v1165 = vpack.c.b16 %v1131, %v1130
    %v1166 = vpack.c.b16 %v1133, %v1132
    %v1167 = vpack.c.b16 %v1135, %v1134
    %v1168 = vpack.c.b16 %v1137, %v1136
    %v1169 = vpack.c.b16 %v1139, %v1138
    %v1170 = vpack.c.b16 %v1141, %v1140
    %v1171 = vpack.c.b16 %v1143, %v1142
    %v1172 = vpack.c.b16 %v1145, %v1144
    %v1173 = vpack.c.b16 %v1147, %v1146
    %v1174 = vpack.c.b16 %v1149, %v1148
    %v1175 = vpack.c.b16 %v1151, %v1150
    %1200 = vmatprep.subr.bf16.mxu0 0
    %1201 = vmatpush1.bf16.msra.mxu0 %v1159
    %1202 = vmatprep.subr.bf16.mxu0 0
    %1203 = vmatpush1.bf16.msra.mxu0 %v1158
    %1204 = vmatprep.subr.bf16.mxu0 0
    %1205 = vmatpush1.bf16.msra.mxu0 %v1157
    %1206 = vmatprep.subr.bf16.mxu0 0
    %1207 = vmatpush1.bf16.msra.mxu0 %v1156
    %1208 = vmatprep.subr.bf16.mxu0 0
    %1209 = vmatpush1.bf16.msra.mxu0 %v1155
    %1210 = vmatprep.subr.bf16.mxu0 0
    %1211 = vmatpush1.bf16.msra.mxu0 %v1154
    %1212 = vmatprep.subr.bf16.mxu0 0
    %1213 = vmatpush1.bf16.msra.mxu0 %v1153
    %1214 = vmatprep.subr.bf16.mxu0 0
    %1215 = vmatpush1.bf16.msra.mxu0 %v1152
    %1216 = vmatprep.subr.bf16.mxu0 0
    %1217 = vmatpush2.bf16.msra.mxu0 %v1167
    %1218 = vmatprep.subr.bf16.mxu0 0
    %1219 = vmatpush2.bf16.msra.mxu0 %v1166
    %1220 = vmatprep.subr.bf16.mxu0 0
    %1221 = vmatpush2.bf16.msra.mxu0 %v1165
    %1222 = vmatprep.subr.bf16.mxu0 0
    %1223 = vmatpush2.bf16.msra.mxu0 %v1164
    %1224 = vmatprep.subr.bf16.mxu0 0
    %1225 = vmatpush2.bf16.msra.mxu0 %v1163
    %1226 = vmatprep.subr.bf16.mxu0 0
    %1227 = vmatpush2.bf16.msra.mxu0 %v1162
    %1228 = vmatprep.subr.bf16.mxu0 0
    %1229 = vmatpush2.bf16.msra.mxu0 %v1161
    %1230 = vmatprep.subr.bf16.mxu0 0
    %1231 = vmatpush2.bf16.msra.mxu0 %v1160
    %1232 = vmatprep.mubr.bf16.mxu0 %v1051
    %1233 = vmatmul.mubr.bf16.gmra.mxu0 %v1050
    %v1234 = vpop.f32.mrf.mxu0
    %v1235 = vadd.f32 %v1048, %v1234
    %v1236 = vpop.f32.mrf.mxu0
    %v1237 = vpop.f32.mrf.mxu0
    %v1238 = vadd.f32 %v1048, %v1237
    %v1239 = vpop.f32.mrf.mxu0
    %1240 = vdwg.mxu0
    %1241 = vmatprep.subr.bf16.mxu0 0
    %1242 = vmatpush1.bf16.msra.mxu0 %v1175
    %1243 = vmatprep.subr.bf16.mxu0 0
    %1244 = vmatpush1.bf16.msra.mxu0 %v1174
    %1245 = vmatprep.subr.bf16.mxu0 0
    %1246 = vmatpush1.bf16.msra.mxu0 %v1173
    %1247 = vmatprep.subr.bf16.mxu0 0
    %1248 = vmatpush1.bf16.msra.mxu0 %v1172
    %1249 = vmatprep.subr.bf16.mxu0 0
    %1250 = vmatpush1.bf16.msra.mxu0 %v1171
    %1251 = vmatprep.subr.bf16.mxu0 0
    %1252 = vmatpush1.bf16.msra.mxu0 %v1170
    %1253 = vmatprep.subr.bf16.mxu0 0
    %1254 = vmatpush1.bf16.msra.mxu0 %v1169
    %1255 = vmatprep.subr.bf16.mxu0 0
    %1256 = vmatpush1.bf16.msra.mxu0 %v1168
    %1257 = vmatprep.subr.bf16.mxu0 0
    %1258 = vmatpush2.bf16.msra.mxu0 0
    %1259 = vmatprep.subr.bf16.mxu0 0
    %1260 = vmatpush2.bf16.msra.mxu0 0
    %1261 = vmatprep.subr.bf16.mxu0 0
    %1262 = vmatpush2.bf16.msra.mxu0 0
    %1263 = vmatprep.subr.bf16.mxu0 0
    %1264 = vmatpush2.bf16.msra.mxu0 0
    %1265 = vmatprep.subr.bf16.mxu0 0
    %1266 = vmatpush2.bf16.msra.mxu0 0
    %1267 = vmatprep.subr.bf16.mxu0 0
    %1268 = vmatpush2.bf16.msra.mxu0 0
    %1269 = vmatprep.subr.bf16.mxu0 0
    %1270 = vmatpush2.bf16.msra.mxu0 0
    %1271 = vmatprep.subr.bf16.mxu0 0
    %1272 = vmatpush2.bf16.msra.mxu0 0
    %1273 = vmatprep.mubr.bf16.mxu0 0
    %1274 = vmatmul.mubr.bf16.gmra.mxu0 %v1052
    %v1275 = vpop.f32.mrf.mxu0
    %v1276 = vadd.f32 %v1235, %v1275
    %v1277 = vpop.f32.mrf.mxu0
    %v1278 = vpop.f32.mrf.mxu0
    %v1279 = vadd.f32 %v1238, %v1278
    %v1280 = vpop.f32.mrf.mxu0
    %1281 = vdwg.mxu0
    %v1282 = vmax.f32 %v1276, 0.0
    %v1283 = vmax.f32 %v1279, 0.0
    %v1284 = vpack.c.bf16 %v1283, %v1282
    %v1286 = vunpack.c.l.b16 %v1284
    %v1287 = vunpack.c.h.b16 %v1284
    %v1288 = vpack.c.b16 %v1286, %v1286
    %v1289 = vpack.c.b16 %v1287, %v1287
    %1290 = vst [vmem:[#allocation3] sm:$0x3] 0
    %1291 = vst [vmem:[#allocation3 + $0x8] sm:$0x3] 0
    %v1292 = vrot.slane %v1288, 6
    %v1293 = vrot.slane %v1292, 4
    %v1294 = vrot.slane %v1289, 6
    %v1295 = vrot.slane %v1294, 4
    %1300 = vst [vmem:[#allocation3] sm:$0xc] %v1292
    %1301 = vst [vmem:[#allocation3 + $0x4] sm:$0x3] %v1293
    %1302 = vst [vmem:[#allocation3 + $0x8] sm:$0xc] %v1294
    %1303 = vst [vmem:[#allocation3 + $0xc] sm:$0x3] %v1295
    %v1304 = vld [vmem:[#allocation3] sm:$0xf]
    %v1305 = vld [vmem:[#allocation3 + $0x8] sm:$0xf]
    %v1306 = vld [vmem:[#allocation3] sm:$0xe]
    %v1307 = vld [vmem:[#allocation3 + $0x4] sm:$0x1]
    %v1308 = vld [vmem:[#allocation3 + $0x8] sm:$0xe]
    %v1309 = vld [vmem:[#allocation3 + $0xc] sm:$0x1]
    %v1310 = vld [vmem:[#allocation3] sm:$0xc]
    %v1311 = vld [vmem:[#allocation3 + $0x4] sm:$0x3]
    %v1312 = vld [vmem:[#allocation3 + $0x8] sm:$0xc]
    %v1313 = vld [vmem:[#allocation3 + $0xc] sm:$0x3]
    %v1318 = vunpack.c.l.b16 %v1306
    %v1319 = vunpack.c.l.b16 %v1307
    %v1320 = vunpack.c.l.b16 %v1308
    %v1321 = vunpack.c.l.b16 %v1309
    %v1322 = vpack.c.b16 %v1319, %v1318
    %v1323 = vpack.c.b16 %v1321, %v1320
    %v1324 = vrot.slane %v1322, 1
    %v1325 = vrot.slane %v1323, 1
    %v1330 = vunpack.c.l.b16 %v1310
    %v1331 = vunpack.c.l.b16 %v1311
    %v1332 = vunpack.c.l.b16 %v1312
    %v1333 = vunpack.c.l.b16 %v1313
    %v1334 = vpack.c.b16 %v1331, %v1330
    %v1335 = vpack.c.b16 %v1333, %v1332
    %v1336 = vrot.slane %v1334, 2
    %v1337 = vrot.slane %v1335, 2
    %v1340 = vunpack.c.l.b16 %v1304
    %v1341 = vunpack.c.l.b16 %v1324
    %v1342 = vunpack.c.l.b16 %v1336
    %v1343 = vunpack.c.l.b16 %v1305
    %v1344 = vunpack.c.l.b16 %v1325
    %v1345 = vunpack.c.l.b16 %v1337
    %v1346 = vld [vmem:[#allocation10] sm:$0xf]
    %v1347 = vld [vmem:[#allocation10 + $0x4] sm:$0xf]
    %v1348 = vld [vmem:[#allocation10 + $0x8] sm:$0xf]
    %v1349 = vld [vmem:[#allocation10 + $0xc] sm:$0xf]
    %v1350 = vld [vmem:[#allocation10 + $0x10] sm:$0xf]
    %v1351 = vld [vmem:[#allocation10 + $0x14] sm:$0xf]
    %v1352 = vld [vmem:[#allocation10 + $0x18] sm:$0xf]
    %v1353 = vld [vmem:[#allocation10 + $0x1c] sm:$0xf]
    %v1354 = vld [vmem:[#allocation10 + $0x20] sm:$0xf]
    %v1355 = vld [vmem:[#allocation10 + $0x24] sm:$0xf]
    %v1356 = vld [vmem:[#allocation10 + $0x28] sm:$0xf]
    %v1357 = vld [vmem:[#allocation10 + $0x2c] sm:$0xf]
    %v1358 = vld [vmem:[#allocation10 + $0x30] sm:$0xf]
    %v1359 = vld [vmem:[#allocation10 + $0x34] sm:$0xf]
    %v1360 = vld [vmem:[#allocation10 + $0x38] sm:$0xf]
    %v1361 = vld [vmem:[#allocation10 + $0x3c] sm:$0xf]
    %v1362 = vld [vmem:[#allocation10 + $0x40] sm:$0xf]
    %v1363 = vld [vmem:[#allocation10 + $0x44] sm:$0xf]
    %v1364 = vld [vmem:[#allocation10 + $0x48] sm:$0xf]
    %v1365 = vld [vmem:[#allocation10 + $0x4c] sm:$0xf]
    %v1366 = vld [vmem:[#allocation10 + $0x50] sm:$0xf]
    %v1367 = vld [vmem:[#allocation10 + $0x54] sm:$0xf]
    %v1368 = vld [vmem:[#allocation10 + $0x58] sm:$0xf]
    %v1369 = vld [vmem:[#allocation10 + $0x5c] sm:$0xf]
    %v1370 = vld [vmem:[#allocation10 + $0x60] sm:$0xf]
    %v1371 = vld [vmem:[#allocation10 + $0x64] sm:$0xf]
    %v1372 = vld [vmem:[#allocation10 + $0x68] sm:$0xf]
    %v1373 = vld [vmem:[#allocation10 + $0x6c] sm:$0xf]
    %v1374 = vld [vmem:[#allocation10 + $0x70] sm:$0xf]
    %v1375 = vld [vmem:[#allocation10 + $0x74] sm:$0xf]
    %v1376 = vld [vmem:[#allocation10 + $0x78] sm:$0xf]
    %v1377 = vld [vmem:[#allocation10 + $0x7c] sm:$0xf]
    %v1378 = vld [vmem:[#allocation10 + $0x80] sm:$0xf]
    %v1379 = vld [vmem:[#allocation10 + $0x84] sm:$0xf]
    %v1380 = vld [vmem:[#allocation10 + $0x88] sm:$0xf]
    %v1381 = vld [vmem:[#allocation10 + $0x8c] sm:$0xf]
    %v1382 = vld [vmem:[#allocation10 + $0x90] sm:$0xf]
    %v1383 = vld [vmem:[#allocation10 + $0x94] sm:$0xf]
    %v1384 = vld [vmem:[#allocation10 + $0x98] sm:$0xf]
    %v1385 = vld [vmem:[#allocation10 + $0x9c] sm:$0xf]
    %v1386 = vld [vmem:[#allocation10 + $0xa0] sm:$0xf]
    %v1387 = vld [vmem:[#allocation10 + $0xa4] sm:$0xf]
    %v1388 = vld [vmem:[#allocation10 + $0xa8] sm:$0xf]
    %v1389 = vld [vmem:[#allocation10 + $0xac] sm:$0xf]
    %v1390 = vld [vmem:[#allocation10 + $0xb0] sm:$0xf]
    %v1391 = vld [vmem:[#allocation10 + $0xb4] sm:$0xf]
    %v1392 = vld [vmem:[#allocation10 + $0xb8] sm:$0xf]
    %v1393 = vld [vmem:[#allocation10 + $0xbc] sm:$0xf]
    %v1394 = vld [vmem:[%s10] sm:$0x1]
    %v1396 = vlaneseq
    %v1397 = vshrl.u32 %v1396, 7
    %v1398 = vsub.s32 0, %v1397
    %v1399 = vrot.slane %v1394, %v1398
    %v1401 = vpack.c.b16 %v1343, %v1340
    %v1402 = vpack.c.b16 %v1344, %v1341
    %v1403 = vpack.c.b16 %v1345, %v1342
    %v1455 = vunpack.c.l.b16 %v1346
    %v1456 = vunpack.c.l.b16 %v1347
    %v1457 = vunpack.c.l.b16 %v1348
    %v1458 = vunpack.c.l.b16 %v1349
    %v1459 = vunpack.c.l.b16 %v1350
    %v1460 = vunpack.c.l.b16 %v1351
    %v1461 = vunpack.c.l.b16 %v1352
    %v1462 = vunpack.c.l.b16 %v1353
    %v1463 = vunpack.c.l.b16 %v1354
    %v1464 = vunpack.c.l.b16 %v1355
    %v1465 = vunpack.c.l.b16 %v1356
    %v1466 = vunpack.c.l.b16 %v1357
    %v1467 = vunpack.c.l.b16 %v1358
    %v1468 = vunpack.c.l.b16 %v1359
    %v1469 = vunpack.c.l.b16 %v1360
    %v1470 = vunpack.c.l.b16 %v1361
    %v1471 = vunpack.c.l.b16 %v1362
    %v1472 = vunpack.c.l.b16 %v1363
    %v1473 = vunpack.c.l.b16 %v1364
    %v1474 = vunpack.c.l.b16 %v1365
    %v1475 = vunpack.c.l.b16 %v1366
    %v1476 = vunpack.c.l.b16 %v1367
    %v1477 = vunpack.c.l.b16 %v1368
    %v1478 = vunpack.c.l.b16 %v1369
    %v1479 = vunpack.c.l.b16 %v1370
    %v1480 = vunpack.c.l.b16 %v1371
    %v1481 = vunpack.c.l.b16 %v1372
    %v1482 = vunpack.c.l.b16 %v1373
    %v1483 = vunpack.c.l.b16 %v1374
    %v1484 = vunpack.c.l.b16 %v1375
    %v1485 = vunpack.c.l.b16 %v1376
    %v1486 = vunpack.c.l.b16 %v1377
    %v1487 = vunpack.c.l.b16 %v1378
    %v1488 = vunpack.c.l.b16 %v1379
    %v1489 = vunpack.c.l.b16 %v1380
    %v1490 = vunpack.c.l.b16 %v1381
    %v1491 = vunpack.c.l.b16 %v1382
    %v1492 = vunpack.c.l.b16 %v1383
    %v1493 = vunpack.c.l.b16 %v1384
    %v1494 = vunpack.c.l.b16 %v1385
    %v1495 = vunpack.c.l.b16 %v1386
    %v1496 = vunpack.c.l.b16 %v1387
    %v1497 = vunpack.c.l.b16 %v1388
    %v1498 = vunpack.c.l.b16 %v1389
    %v1499 = vunpack.c.l.b16 %v1390
    %v1500 = vunpack.c.l.b16 %v1391
    %v1501 = vunpack.c.l.b16 %v1392
    %v1502 = vunpack.c.l.b16 %v1393
    %v1503 = vpack.c.b16 %v1456, %v1455
    %v1504 = vpack.c.b16 %v1458, %v1457
    %v1505 = vpack.c.b16 %v1460, %v1459
    %v1506 = vpack.c.b16 %v1462, %v1461
    %v1507 = vpack.c.b16 %v1464, %v1463
    %v1508 = vpack.c.b16 %v1466, %v1465
    %v1509 = vpack.c.b16 %v1468, %v1467
    %v1510 = vpack.c.b16 %v1470, %v1469
    %v1511 = vpack.c.b16 %v1472, %v1471
    %v1512 = vpack.c.b16 %v1474, %v1473
    %v1513 = vpack.c.b16 %v1476, %v1475
    %v1514 = vpack.c.b16 %v1478, %v1477
    %v1515 = vpack.c.b16 %v1480, %v1479
    %v1516 = vpack.c.b16 %v1482, %v1481
    %v1517 = vpack.c.b16 %v1484, %v1483
    %v1518 = vpack.c.b16 %v1486, %v1485
    %v1519 = vpack.c.b16 %v1488, %v1487
    %v1520 = vpack.c.b16 %v1490, %v1489
    %v1521 = vpack.c.b16 %v1492, %v1491
    %v1522 = vpack.c.b16 %v1494, %v1493
    %v1523 = vpack.c.b16 %v1496, %v1495
    %v1524 = vpack.c.b16 %v1498, %v1497
    %v1525 = vpack.c.b16 %v1500, %v1499
    %v1526 = vpack.c.b16 %v1502, %v1501
    %1551 = vmatprep.subr.bf16.mxu0 0
    %1552 = vmatpush1.bf16.msra.mxu0 %v1510
    %1553 = vmatprep.subr.bf16.mxu0 0
    %1554 = vmatpush1.bf16.msra.mxu0 %v1509
    %1555 = vmatprep.subr.bf16.mxu0 0
    %1556 = vmatpush1.bf16.msra.mxu0 %v1508
    %1557 = vmatprep.subr.bf16.mxu0 0
    %1558 = vmatpush1.bf16.msra.mxu0 %v1507
    %1559 = vmatprep.subr.bf16.mxu0 0
    %1560 = vmatpush1.bf16.msra.mxu0 %v1506
    %1561 = vmatprep.subr.bf16.mxu0 0
    %1562 = vmatpush1.bf16.msra.mxu0 %v1505
    %1563 = vmatprep.subr.bf16.mxu0 0
    %1564 = vmatpush1.bf16.msra.mxu0 %v1504
    %1565 = vmatprep.subr.bf16.mxu0 0
    %1566 = vmatpush1.bf16.msra.mxu0 %v1503
    %1567 = vmatprep.subr.bf16.mxu0 0
    %1568 = vmatpush2.bf16.msra.mxu0 %v1518
    %1569 = vmatprep.subr.bf16.mxu0 0
    %1570 = vmatpush2.bf16.msra.mxu0 %v1517
    %1571 = vmatprep.subr.bf16.mxu0 0
    %1572 = vmatpush2.bf16.msra.mxu0 %v1516
    %1573 = vmatprep.subr.bf16.mxu0 0
    %1574 = vmatpush2.bf16.msra.mxu0 %v1515
    %1575 = vmatprep.subr.bf16.mxu0 0
    %1576 = vmatpush2.bf16.msra.mxu0 %v1514
    %1577 = vmatprep.subr.bf16.mxu0 0
    %1578 = vmatpush2.bf16.msra.mxu0 %v1513
    %1579 = vmatprep.subr.bf16.mxu0 0
    %1580 = vmatpush2.bf16.msra.mxu0 %v1512
    %1581 = vmatprep.subr.bf16.mxu0 0
    %1582 = vmatpush2.bf16.msra.mxu0 %v1511
    %1583 = vmatprep.mubr.bf16.mxu0 %v1402
    %1584 = vmatmul.mubr.bf16.gmra.mxu0 %v1401
    %v1585 = vpop.f32.mrf.mxu0
    %v1586 = vadd.f32 %v1399, %v1585
    %v1587 = vpop.f32.mrf.mxu0
    %v1588 = vpop.f32.mrf.mxu0
    %v1589 = vadd.f32 %v1399, %v1588
    %v1590 = vpop.f32.mrf.mxu0
    %1591 = vdwg.mxu0
    %1592 = vmatprep.subr.bf16.mxu0 0
    %1593 = vmatpush1.bf16.msra.mxu0 %v1526
    %1594 = vmatprep.subr.bf16.mxu0 0
    %1595 = vmatpush1.bf16.msra.mxu0 %v1525
    %1596 = vmatprep.subr.bf16.mxu0 0
    %1597 = vmatpush1.bf16.msra.mxu0 %v1524
    %1598 = vmatprep.subr.bf16.mxu0 0
    %1599 = vmatpush1.bf16.msra.mxu0 %v1523
    %1600 = vmatprep.subr.bf16.mxu0 0
    %1601 = vmatpush1.bf16.msra.mxu0 %v1522
    %1602 = vmatprep.subr.bf16.mxu0 0
    %1603 = vmatpush1.bf16.msra.mxu0 %v1521
    %1604 = vmatprep.subr.bf16.mxu0 0
    %1605 = vmatpush1.bf16.msra.mxu0 %v1520
    %1606 = vmatprep.subr.bf16.mxu0 0
    %1607 = vmatpush1.bf16.msra.mxu0 %v1519
    %1608 = vmatprep.subr.bf16.mxu0 0
    %1609 = vmatpush2.bf16.msra.mxu0 0
    %1610 = vmatprep.subr.bf16.mxu0 0
    %1611 = vmatpush2.bf16.msra.mxu0 0
    %1612 = vmatprep.subr.bf16.mxu0 0
    %1613 = vmatpush2.bf16.msra.mxu0 0
    %1614 = vmatprep.subr.bf16.mxu0 0
    %1615 = vmatpush2.bf16.msra.mxu0 0
    %1616 = vmatprep.subr.bf16.mxu0 0
    %1617 = vmatpush2.bf16.msra.mxu0 0
    %1618 = vmatprep.subr.bf16.mxu0 0
    %1619 = vmatpush2.bf16.msra.mxu0 0
    %1620 = vmatprep.subr.bf16.mxu0 0
    %1621 = vmatpush2.bf16.msra.mxu0 0
    %1622 = vmatprep.subr.bf16.mxu0 0
    %1623 = vmatpush2.bf16.msra.mxu0 0
    %1624 = vmatprep.mubr.bf16.mxu0 0
    %1625 = vmatmul.mubr.bf16.gmra.mxu0 %v1403
    %v1626 = vpop.f32.mrf.mxu0
    %v1627 = vadd.f32 %v1586, %v1626
    %v1628 = vpop.f32.mrf.mxu0
    %v1629 = vpop.f32.mrf.mxu0
    %v1630 = vadd.f32 %v1589, %v1629
    %v1631 = vpop.f32.mrf.mxu0
    %1632 = vdwg.mxu0
    %v1633 = vadd.f32 %v1627, %v929
    %v1634 = vadd.f32 %v1630, %v930
    %v1635 = vmax.f32 %v1633, 0.0
    %v1636 = vmax.f32 %v1634, 0.0
    %v1638 = vrot.slane %v1635, 7
    %v1641 = vrot.slane %v1636, 6
    %vm1643 = vcmask 1040384
    %v1644 = vsel %vm1643, %v1638, %v1641
    %v1645 = vpack.c.bf16 %v1644, %v1644
    %v1646 = vld [vmem:[%s11] sm:$0xf]
    %v1647 = vld [vmem:[%s11 + $0x4] sm:$0xf]
    %v1648 = vld [vmem:[%s11 + $0x8] sm:$0xf]
    %v1649 = vld [vmem:[%s11 + $0xc] sm:$0xf]
    %v1650 = vld [vmem:[%s11 + $0x10] sm:$0xf]
    %v1651 = vld [vmem:[%s11 + $0x14] sm:$0xf]
    %v1652 = vld [vmem:[%s11 + $0x18] sm:$0xf]
    %v1653 = vld [vmem:[%s11 + $0x1c] sm:$0xf]
    %v1654 = vld [vmem:[%s11 + $0x20] sm:$0xf]
    %v1655 = vld [vmem:[%s11 + $0x24] sm:$0xf]
    %v1656 = vld [vmem:[%s11 + $0x28] sm:$0xf]
    %v1657 = vld [vmem:[%s11 + $0x2c] sm:$0xf]
    %v1658 = vld [vmem:[%s11 + $0x30] sm:$0xf]
    %v1659 = vld [vmem:[%s11 + $0x34] sm:$0xf]
    %v1660 = vld [vmem:[%s11 + $0x38] sm:$0xf]
    %v1661 = vld [vmem:[%s11 + $0x3c] sm:$0xf]
    %v1662 = vld [vmem:[%s12] sm:$0x1]
    %v1664 = vlaneseq
    %v1665 = vshrl.u32 %v1664, 7
    %v1666 = vsub.s32 0, %v1665
    %v1667 = vrot.slane %v1662, %v1666
    %v1685 = vunpack.c.l.b16 %v1646
    %v1686 = vunpack.c.l.b16 %v1647
    %v1687 = vunpack.c.l.b16 %v1648
    %v1688 = vunpack.c.l.b16 %v1649
    %v1689 = vunpack.c.l.b16 %v1650
    %v1690 = vunpack.c.l.b16 %v1651
    %v1691 = vunpack.c.l.b16 %v1652
    %v1692 = vunpack.c.l.b16 %v1653
    %v1693 = vunpack.c.l.b16 %v1654
    %v1694 = vunpack.c.l.b16 %v1655
    %v1695 = vunpack.c.l.b16 %v1656
    %v1696 = vunpack.c.l.b16 %v1657
    %v1697 = vunpack.c.l.b16 %v1658
    %v1698 = vunpack.c.l.b16 %v1659
    %v1699 = vunpack.c.l.b16 %v1660
    %v1700 = vunpack.c.l.b16 %v1661
    %v1701 = vpack.c.b16 %v1686, %v1685
    %v1702 = vpack.c.b16 %v1688, %v1687
    %v1703 = vpack.c.b16 %v1690, %v1689
    %v1704 = vpack.c.b16 %v1692, %v1691
    %v1705 = vpack.c.b16 %v1694, %v1693
    %v1706 = vpack.c.b16 %v1696, %v1695
    %v1707 = vpack.c.b16 %v1698, %v1697
    %v1708 = vpack.c.b16 %v1700, %v1699
    %1717 = vmatprep.subr.bf16.mxu0 0
    %1718 = vmatpush1.bf16.msra.mxu0 %v1708
    %1719 = vmatprep.subr.bf16.mxu0 0
    %1720 = vmatpush1.bf16.msra.mxu0 %v1707
    %1721 = vmatprep.subr.bf16.mxu0 0
    %1722 = vmatpush1.bf16.msra.mxu0 %v1706
    %1723 = vmatprep.subr.bf16.mxu0 0
    %1724 = vmatpush1.bf16.msra.mxu0 %v1705
    %1725 = vmatprep.subr.bf16.mxu0 0
    %1726 = vmatpush1.bf16.msra.mxu0 %v1704
    %1727 = vmatprep.subr.bf16.mxu0 0
    %1728 = vmatpush1.bf16.msra.mxu0 %v1703
    %1729 = vmatprep.subr.bf16.mxu0 0
    %1730 = vmatpush1.bf16.msra.mxu0 %v1702
    %1731 = vmatprep.subr.bf16.mxu0 0
    %1732 = vmatpush1.bf16.msra.mxu0 %v1701
    %1733 = vmatprep.subr.bf16.mxu0 0
    %1734 = vmatpush2.bf16.msra.mxu0 0
    %1735 = vmatprep.subr.bf16.mxu0 0
    %1736 = vmatpush2.bf16.msra.mxu0 0
    %1737 = vmatprep.subr.bf16.mxu0 0
    %1738 = vmatpush2.bf16.msra.mxu0 0
    %1739 = vmatprep.subr.bf16.mxu0 0
    %1740 = vmatpush2.bf16.msra.mxu0 0
    %1741 = vmatprep.subr.bf16.mxu0 0
    %1742 = vmatpush2.bf16.msra.mxu0 0
    %1743 = vmatprep.subr.bf16.mxu0 0
    %1744 = vmatpush2.bf16.msra.mxu0 0
    %1745 = vmatprep.subr.bf16.mxu0 0
    %1746 = vmatpush2.bf16.msra.mxu0 0
    %1747 = vmatprep.subr.bf16.mxu0 0
    %1748 = vmatpush2.bf16.msra.mxu0 0
    %1749 = vmatprep.mubr.bf16.mxu0 0
    %1750 = vmatmul.mubr.bf16.gmra.mxu0 %v1645
    %v1751 = vpop.f32.mrf.mxu0
    %v1752 = vadd.f32 %v1667, %v1751
    %v1753 = vpop.f32.mrf.mxu0
    %v1754 = vpop.f32.mrf.mxu0
    %v1755 = vpop.f32.mrf.mxu0
    %1756 = vdwg.mxu0
    %vm1757 = vcmask 9216
    %1758 = vst.msk [vmem:[#allocation12] sm:$0x3] %vm1757, %v1752
    // Predicated region
    $region70: #{tpu_custom_call.1} parent=1 // pred_check
      _
    $region71: #{tpu_custom_call.1} parent=1 // pred_check_branch
      %1760 = sbr.rel (0) target = $region73
    $region72: #{tpu_custom_call.1} parent=1 // pred_region
      %s1762 = ssub.s32 32, 32
      %1763 = vsyncadd [#allocation6], %s1762
      %s1765 = sshll.u32 [#allocation12], 4
      %s1766 = int_to_ptr.vmem [resolvable:$true] %s1765
      %1768 = dma.vmem_to_hbm [thread:$0]  %s1766, 32, %s13, [#allocation6]
    $region73: #{tpu_custom_call.1} parent=1 // pred_fallthru
      _
    // Predicated region
    $region74: #{tpu_custom_call.1} parent=1 // pred_check
      _
    $region75: #{tpu_custom_call.1} parent=1 // pred_check_branch
      %1770 = sbr.rel (0) target = $region77
    $region76: #{tpu_custom_call.1} parent=1 // pred_region
      %1771 = dma.done [#allocation6], 32
    $region77: #{tpu_custom_call.1} parent=1 // pred_fallthru
      _
    %1772 = vsyncpa [#allocation5], 1
    %1773 = vsyncpa [#allocation8], 1
    %1774 = vsyncpa [#allocation11], 1
    %1775 = vsyncpa [#allocation6], 1

</llo_original>
